<compile_context>
chip_gen: v7x
topology: tpu7x:2x2x1
jax: 0.10.0
libtpu: 0.0.40
codegen_flags: <defaults>
</compile_context>

<pallas_src>
import numpy as np
import jax
import jax.numpy as jnp
from jax.experimental import pallas as pl
from jax.experimental.pallas import tpu as pltpu

# TODO(synk): training-mode stochastic Dropout and batch-statistics BatchNorm
# are not reproduced here (eval-mode forward only).

LANE = 128
SUBLANE_BF16 = 16   # min sublane tile multiple for bf16 operands


def _round_up(v, m):
    return ((v + m - 1) // m) * m


def fcnet_kernel(x_ref, w1_ref, b1_ref, w2_ref, b2_ref, w3_ref, b3_ref, o_ref):
    # Layer 1: Linear -> ReLU   (BN1 already folded into w2/b2, dropout = id)
    # bf16 x bf16 MXU pass with f32 accumulation.
    h = jnp.dot(x_ref[...], w1_ref[...], preferred_element_type=jnp.float32)
    h = jnp.maximum(h + b1_ref[...], 0.0)
    # Layer 2: Linear -> ReLU   (BN2 already folded into w3/b3, dropout = id)
    h = jnp.dot(h.astype(jnp.bfloat16), w2_ref[...],
                preferred_element_type=jnp.float32)
    h = jnp.maximum(h + b2_ref[...], 0.0)
    # Output layer kept in f32 for accuracy (<20% of FLOPs). Columns are
    # padded to a full 128-lane register -> dense, unmasked vst.
    out = jnp.dot(h, w3_ref[...], preferred_element_type=jnp.float32) + b3_ref[...]
    o_ref[...] = out.astype(o_ref.dtype)


def _fold_and_pad(params, k_pad):
    """Fold BN scale/shift into the next Linear; pad K rows and output lanes.

    Layers 1-2 weights are returned in bf16 (MXU operands); all biases and
    the small final layer stay f32.
    """
    (w1, b1, s1, t1, w2, b2, s2, t2, w3, b3) = params
    # BN after ReLU:  (h*s + t) @ W + b  ==  h @ (s.T * W) + (t @ W + b)
    w2f = s1.reshape(-1, 1) * w2
    b2f = b2 + t1 @ w2
    w3f = s2.reshape(-1, 1) * w3
    b3f = b3 + t2 @ w3
    # Pad input-feature rows of w1 with zeros (matches zero-padded x columns).
    k = w1.shape[0]
    if k_pad != k:
        w1 = jnp.pad(w1, ((0, k_pad - k), (0, 0)))
    # Pad the class dim to a full 128-lane width for a lane-dense output.
    nc = w3f.shape[1]
    out_pad = _round_up(nc, LANE)
    if out_pad != nc:
        w3f = jnp.pad(w3f, ((0, 0), (0, out_pad - nc)))
        b3f = jnp.pad(b3f, ((0, 0), (0, out_pad - nc)))
    w1 = w1.astype(jnp.bfloat16)
    w2f = w2f.astype(jnp.bfloat16)
    return (w1, b1, w2f, b2f, w3f, b3f), nc, out_pad


def fcnet_forward(x_nchw, params, *, tm=1024):
    """x_nchw: (N, C, H, W) float32. Returns (N, num_classes) float32."""
    n = x_nchw.shape[0]
    x_flat = x_nchw.reshape(n, -1)            # row-major flatten == nn.Flatten()
    k = x_flat.shape[1]

    # Pad feature dim K to a multiple of 128 (zeros are inert in the dot),
    # then cast activations to bf16 for the MXU (halves the x HBM stream).
    k_pad = _round_up(k, LANE)
    if k_pad != k:
        x_flat = jnp.pad(x_flat, ((0, 0), (0, k_pad - k)))
    x_flat = x_flat.astype(jnp.bfloat16)

    (w1, b1, w2, b2, w3, b3), num_classes, out_pad = _fold_and_pad(params, k_pad)
    h1 = w1.shape[1]
    h2 = w2.shape[1]

    # Batch tile: cap at TM, but force >= 2 grid steps whenever the batch
    # allows it so the "parallel" axis actually spans v7x's two TensorCores.
    # Rounded to the bf16 sublane multiple (16). No batch padding: Pallas
    # masks the partial edge block, and rows are independent so garbage in
    # the out-of-range rows never leaks into valid ones.
    tm_eff = min(tm, max(SUBLANE_BF16, _round_up(pl.cdiv(n, 2), SUBLANE_BF16)))
    grid = (pl.cdiv(n, tm_eff),)

    flops = 2 * n * (k_pad * h1 + h1 * h2 + h2 * out_pad)
    bytes_accessed = int(
        x_flat.size * x_flat.dtype.itemsize
        + sum(int(a.size) * a.dtype.itemsize for a in (w1, b1, w2, b2, w3, b3))
        + n * out_pad * 4)

    def run(single_buffer_weights):
        # Weights/biases are grid-invariant: keep them resident and (when
        # supported) single-buffered to free VMEM for larger batch tiles.
        if single_buffer_weights:
            resident = dict(pipeline_mode=pl.Buffered(buffer_count=1))
        else:
            resident = {}
        out = pl.pallas_call(
            fcnet_kernel,
            out_shape=jax.ShapeDtypeStruct((n, out_pad), jnp.float32),
            grid=grid,
            in_specs=[
                pl.BlockSpec((tm_eff, k_pad), lambda i: (i, 0)),   # x: batch-tiled
                pl.BlockSpec((k_pad, h1), lambda i: (0, 0), **resident),
                pl.BlockSpec((1, h1), lambda i: (0, 0), **resident),
                pl.BlockSpec((h1, h2), lambda i: (0, 0), **resident),
                pl.BlockSpec((1, h2), lambda i: (0, 0), **resident),
                pl.BlockSpec((h2, out_pad), lambda i: (0, 0), **resident),
                pl.BlockSpec((1, out_pad), lambda i: (0, 0), **resident),
            ],
            out_specs=pl.BlockSpec((tm_eff, out_pad), lambda i: (i, 0)),
            compiler_params=pltpu.CompilerParams(
                dimension_semantics=("parallel",),   # batch tiles across TCs
                vmem_limit_bytes=48 * 1024 * 1024),
            cost_estimate=pl.CostEstimate(
                flops=flops, transcendentals=0, bytes_accessed=bytes_accessed),
        )(x_flat, w1, b1, w2, b2, w3, b3)
        return jax.block_until_ready(out)

    try:
        out = run(single_buffer_weights=True)
    except Exception:
        # Fallback if this JAX/Mosaic build rejects pipeline_mode=Buffered(1).
        out = run(single_buffer_weights=False)

    return out[:, :num_classes]


def make_params(key, input_size, hidden_sizes, num_classes, eps=1e-5):
    """Deterministic parameter init mirroring FCNet.__init__ shapes.

    Linear weights stored transposed as (in, out). BatchNorm1d parameters
    (gamma, beta, running_mean, running_var) are expressed as per-feature
    scale/shift:  y = x * scale + shift.
    """
    sizes = [input_size] + list(hidden_sizes)
    keys = jax.random.split(key, 16)
    ki = iter(range(16))

    def linear(kw, kb, fan_in, fan_out):
        bound = 1.0 / np.sqrt(fan_in)
        w = jax.random.uniform(kw, (fan_in, fan_out), jnp.float32, -bound, bound)
        b = jax.random.uniform(kb, (1, fan_out), jnp.float32, -bound, bound)
        return w, b

    def bn(kg, kb, km, kv, feat):
        gamma = 1.0 + 0.1 * jax.random.normal(kg, (1, feat), jnp.float32)
        beta = 0.1 * jax.random.normal(kb, (1, feat), jnp.float32)
        mean = 0.1 * jax.random.normal(km, (1, feat), jnp.float32)
        var = jnp.abs(1.0 + 0.1 * jax.random.normal(kv, (1, feat), jnp.float32))
        scale = gamma / jnp.sqrt(var + eps)
        shift = beta - mean * scale
        return scale, shift

    w1, b1 = linear(keys[next(ki)], keys[next(ki)], sizes[0], sizes[1])
    s1, t1 = bn(keys[next(ki)], keys[next(ki)], keys[next(ki)], keys[next(ki)], sizes[1])
    w2, b2 = linear(keys[next(ki)], keys[next(ki)], sizes[1], sizes[2])
    s2, t2 = bn(keys[next(ki)], keys[next(ki)], keys[next(ki)], keys[next(ki)], sizes[2])
    w3, b3 = linear(keys[next(ki)], keys[next(ki)], sizes[2], num_classes)
    return (w1, b1, s1, t1, w2, b2, s2, t2, w3, b3)


def fcnet_reference(x_nchw, params):
    """Pure-JAX f32 reference of the same eval-mode forward pass (unfolded BN)."""
    (w1, b1, s1, t1, w2, b2, s2, t2, w3, b3) = params
    x = x_nchw.reshape(x_nchw.shape[0], -1)
    h = jnp.maximum(x @ w1 + b1, 0.0) * s1 + t1
    h = jnp.maximum(h @ w2 + b2, 0.0) * s2 + t2
    return h @ w3 + b3


if __name__ == "__main__":
    # Small shapes consistent with the module: (2, 3, 16, 16) -> input_size 768.
    batch, C, H, W = 2, 3, 16, 16
    input_size = C * H * W
    hidden_sizes = [256, 128]
    num_classes = 10

    key = jax.random.PRNGKey(0)
    kx, kp = jax.random.split(key)
    x = jax.random.normal(kx, (batch, C, H, W), jnp.float32)
    params = make_params(kp, input_size, hidden_sizes, num_classes)

    out = fcnet_forward(x, params)
    out = jax.block_until_ready(out)

    ref = fcnet_reference(x, params)
    assert out.shape == (batch, num_classes)
    assert bool(jnp.all(jnp.isfinite(out)))
    # Layers 1-2 run in bf16 on the MXU (f32 accumulation), so the comparison
    # against the f32 reference uses a bf16-appropriate tolerance.
    np.testing.assert_allclose(np.asarray(out), np.asarray(ref), rtol=5e-2, atol=5e-2)

    print("KERNEL_OK")
</pallas_src>

<mosaic_0001>
module attributes {stable_mosaic.version = 11 : i64} {
  func.func @fcnet_kernel(%arg0: i32, %arg1: memref<16x768xbf16, #tpu.memory_space<vmem>>, %arg2: memref<768x256xbf16, #tpu.memory_space<vmem>>, %arg3: memref<1x256xf32, #tpu.memory_space<vmem>>, %arg4: memref<256x128xbf16, #tpu.memory_space<vmem>>, %arg5: memref<1x128xf32, #tpu.memory_space<vmem>>, %arg6: memref<128x128xf32, #tpu.memory_space<vmem>>, %arg7: memref<1x128xf32, #tpu.memory_space<vmem>>, %arg8: memref<16x128xf32, #tpu.memory_space<vmem>>) attributes {dimension_semantics = [#tpu.dimension_semantics<parallel>], iteration_bounds = array<i64: 1>, scalar_prefetch = 0 : i64, scratch_operands = 0 : i64, tpu.core_type = #tpu.core_type<tc>, window_params = [{transform_indices = @transform_0, window_bounds = array<i64: 16, 768>}, {pipeline_mode = #tpu.pipeline_mode<synchronous>, transform_indices = @transform_1, window_bounds = array<i64: 768, 256>}, {pipeline_mode = #tpu.pipeline_mode<synchronous>, transform_indices = @transform_2, window_bounds = array<i64: 1, 256>}, {pipeline_mode = #tpu.pipeline_mode<synchronous>, transform_indices = @transform_3, window_bounds = array<i64: 256, 128>}, {pipeline_mode = #tpu.pipeline_mode<synchronous>, transform_indices = @transform_4, window_bounds = array<i64: 1, 128>}, {pipeline_mode = #tpu.pipeline_mode<synchronous>, transform_indices = @transform_5, window_bounds = array<i64: 128, 128>}, {pipeline_mode = #tpu.pipeline_mode<synchronous>, transform_indices = @transform_6, window_bounds = array<i64: 1, 128>}, {transform_indices = @transform_7, window_bounds = array<i64: 16, 128>}]} {
    %c0 = arith.constant 0 : index
    %c0_0 = arith.constant 0 : index
    %0 = vector.load %arg1[%c0, %c0_0] : memref<16x768xbf16, #tpu.memory_space<vmem>>, vector<16x768xbf16>
    %c0_1 = arith.constant 0 : index
    %c0_2 = arith.constant 0 : index
    %1 = vector.load %arg2[%c0_1, %c0_2] : memref<768x256xbf16, #tpu.memory_space<vmem>>, vector<768x256xbf16>
    %cst = arith.constant dense<0.000000e+00> : vector<16x256xf32>
    %2 = tpu.matmul %0, %1, %cst {dimension_numbers = #tpu.dot_dimension_numbers<[1], [0], [0], [1], [0, 0, 1, 1], [], []>} : vector<16x768xbf16>, vector<768x256xbf16>, vector<16x256xf32> -> vector<16x256xf32>
    %c0_3 = arith.constant 0 : index
    %c0_4 = arith.constant 0 : index
    %3 = vector.load %arg3[%c0_3, %c0_4] : memref<1x256xf32, #tpu.memory_space<vmem>>, vector<1x256xf32>
    %4 = vector.broadcast %3 : vector<1x256xf32> to vector<16x256xf32>
    %5 = arith.addf %2, %4 : vector<16x256xf32>
    %cst_5 = arith.constant 0.000000e+00 : f32
    %6 = vector.broadcast %cst_5 : f32 to vector<16x256xf32>
    %7 = arith.maximumf %5, %6 : vector<16x256xf32>
    %8 = arith.truncf %7 : vector<16x256xf32> to vector<16x256xbf16>
    %c0_6 = arith.constant 0 : index
    %c0_7 = arith.constant 0 : index
    %9 = vector.load %arg4[%c0_6, %c0_7] : memref<256x128xbf16, #tpu.memory_space<vmem>>, vector<256x128xbf16>
    %cst_8 = arith.constant dense<0.000000e+00> : vector<16x128xf32>
    %10 = tpu.matmul %8, %9, %cst_8 {dimension_numbers = #tpu.dot_dimension_numbers<[1], [0], [0], [1], [0, 0, 1, 1], [], []>} : vector<16x256xbf16>, vector<256x128xbf16>, vector<16x128xf32> -> vector<16x128xf32>
    %c0_9 = arith.constant 0 : index
    %c0_10 = arith.constant 0 : index
    %11 = vector.load %arg5[%c0_9, %c0_10] : memref<1x128xf32, #tpu.memory_space<vmem>>, vector<1x128xf32>
    %12 = vector.broadcast %11 : vector<1x128xf32> to vector<16x128xf32>
    %13 = arith.addf %10, %12 : vector<16x128xf32>
    %cst_11 = arith.constant 0.000000e+00 : f32
    %14 = vector.broadcast %cst_11 : f32 to vector<16x128xf32>
    %15 = arith.maximumf %13, %14 : vector<16x128xf32>
    %c0_12 = arith.constant 0 : index
    %c0_13 = arith.constant 0 : index
    %16 = vector.load %arg6[%c0_12, %c0_13] : memref<128x128xf32, #tpu.memory_space<vmem>>, vector<128x128xf32>
    %cst_14 = arith.constant dense<0.000000e+00> : vector<16x128xf32>
    %17 = tpu.matmul %15, %16, %cst_14 {dimension_numbers = #tpu.dot_dimension_numbers<[1], [0], [0], [1], [0, 0, 1, 1], [], []>} : vector<16x128xf32>, vector<128x128xf32>, vector<16x128xf32> -> vector<16x128xf32>
    %c0_15 = arith.constant 0 : index
    %c0_16 = arith.constant 0 : index
    %18 = vector.load %arg7[%c0_15, %c0_16] : memref<1x128xf32, #tpu.memory_space<vmem>>, vector<1x128xf32>
    %19 = vector.broadcast %18 : vector<1x128xf32> to vector<16x128xf32>
    %20 = arith.addf %17, %19 : vector<16x128xf32>
    %c0_17 = arith.constant 0 : index
    %c0_18 = arith.constant 0 : index
    %21 = vector.load %arg8[%c0_17, %c0_18] : memref<16x128xf32, #tpu.memory_space<vmem>>, vector<16x128xf32>
    tpu.vector_store %arg8[%c0_17, %c0_18], %20 {strides = array<i32>} : memref<16x128xf32, #tpu.memory_space<vmem>>, vector<16x128xf32>,
    return
  }
  func.func @transform_0(%arg0: i32) -> (i32, i32) {
    %c0_i32 = arith.constant 0 : i32
    %c0_i32_0 = arith.constant 0 : i32
    return %arg0, %c0_i32 : i32, i32
  }
  func.func @transform_1(%arg0: i32) -> (i32, i32) {
    %c0_i32 = arith.constant 0 : i32
    %c0_i32_0 = arith.constant 0 : i32
    %c0_i32_1 = arith.constant 0 : i32
    return %c0_i32, %c0_i32_0 : i32, i32
  }
  func.func @transform_2(%arg0: i32) -> (i32, i32) {
    %c0_i32 = arith.constant 0 : i32
    %c0_i32_0 = arith.constant 0 : i32
    %c0_i32_1 = arith.constant 0 : i32
    return %c0_i32, %c0_i32_0 : i32, i32
  }
  func.func @transform_3(%arg0: i32) -> (i32, i32) {
    %c0_i32 = arith.constant 0 : i32
    %c0_i32_0 = arith.constant 0 : i32
    %c0_i32_1 = arith.constant 0 : i32
    return %c0_i32, %c0_i32_0 : i32, i32
  }
  func.func @transform_4(%arg0: i32) -> (i32, i32) {
    %c0_i32 = arith.constant 0 : i32
    %c0_i32_0 = arith.constant 0 : i32
    %c0_i32_1 = arith.constant 0 : i32
    return %c0_i32, %c0_i32_0 : i32, i32
  }
  func.func @transform_5(%arg0: i32) -> (i32, i32) {
    %c0_i32 = arith.constant 0 : i32
    %c0_i32_0 = arith.constant 0 : i32
    %c0_i32_1 = arith.constant 0 : i32
    return %c0_i32, %c0_i32_0 : i32, i32
  }
  func.func @transform_6(%arg0: i32) -> (i32, i32) {
    %c0_i32 = arith.constant 0 : i32
    %c0_i32_0 = arith.constant 0 : i32
    %c0_i32_1 = arith.constant 0 : i32
    return %c0_i32, %c0_i32_0 : i32, i32
  }
  func.func @transform_7(%arg0: i32) -> (i32, i32) {
    %c0_i32 = arith.constant 0 : i32
    %c0_i32_0 = arith.constant 0 : i32
    return %arg0, %c0_i32 : i32, i32
  }
}

module attributes {stable_mosaic.version = 11 : i64} {
  func.func @fcnet_kernel(%arg0: i32, %arg1: memref<16x768xbf16, #tpu.memory_space<vmem>>, %arg2: memref<768x256xbf16, #tpu.memory_space<vmem>>, %arg3: memref<1x256xf32, #tpu.memory_space<vmem>>, %arg4: memref<256x128xbf16, #tpu.memory_space<vmem>>, %arg5: memref<1x128xf32, #tpu.memory_space<vmem>>, %arg6: memref<128x128xf32, #tpu.memory_space<vmem>>, %arg7: memref<1x128xf32, #tpu.memory_space<vmem>>, %arg8: memref<16x128xf32, #tpu.memory_space<vmem>>) attributes {dimension_semantics = [#tpu.dimension_semantics<parallel>], iteration_bounds = array<i64: 1>, scalar_prefetch = 0 : i64, scratch_operands = 0 : i64, tpu.core_type = #tpu.core_type<tc>, window_params = [{transform_indices = @transform_0, window_bounds = array<i64: 16, 768>}, {pipeline_mode = #tpu.pipeline_mode<synchronous>, transform_indices = @transform_1, window_bounds = array<i64: 768, 256>}, {pipeline_mode = #tpu.pipeline_mode<synchronous>, transform_indices = @transform_2, window_bounds = array<i64: 1, 256>}, {pipeline_mode = #tpu.pipeline_mode<synchronous>, transform_indices = @transform_3, window_bounds = array<i64: 256, 128>}, {pipeline_mode = #tpu.pipeline_mode<synchronous>, transform_indices = @transform_4, window_bounds = array<i64: 1, 128>}, {pipeline_mode = #tpu.pipeline_mode<synchronous>, transform_indices = @transform_5, window_bounds = array<i64: 128, 128>}, {pipeline_mode = #tpu.pipeline_mode<synchronous>, transform_indices = @transform_6, window_bounds = array<i64: 1, 128>}, {transform_indices = @transform_7, window_bounds = array<i64: 16, 128>}]} {
    %c0 = arith.constant 0 : index
    %c0_0 = arith.constant 0 : index
    %0 = vector.load %arg1[%c0, %c0_0] : memref<16x768xbf16, #tpu.memory_space<vmem>>, vector<16x768xbf16>
    %c0_1 = arith.constant 0 : index
    %c0_2 = arith.constant 0 : index
    %1 = vector.load %arg2[%c0_1, %c0_2] : memref<768x256xbf16, #tpu.memory_space<vmem>>, vector<768x256xbf16>
    %cst = arith.constant dense<0.000000e+00> : vector<16x256xf32>
    %2 = tpu.matmul %0, %1, %cst {dimension_numbers = #tpu.dot_dimension_numbers<[1], [0], [0], [1], [0, 0, 1, 1], [], []>} : vector<16x768xbf16>, vector<768x256xbf16>, vector<16x256xf32> -> vector<16x256xf32>
    %c0_3 = arith.constant 0 : index
    %c0_4 = arith.constant 0 : index
    %3 = vector.load %arg3[%c0_3, %c0_4] : memref<1x256xf32, #tpu.memory_space<vmem>>, vector<1x256xf32>
    %4 = vector.broadcast %3 : vector<1x256xf32> to vector<16x256xf32>
    %5 = arith.addf %2, %4 : vector<16x256xf32>
    %cst_5 = arith.constant 0.000000e+00 : f32
    %6 = vector.broadcast %cst_5 : f32 to vector<16x256xf32>
    %7 = arith.maximumf %5, %6 : vector<16x256xf32>
    %8 = arith.truncf %7 : vector<16x256xf32> to vector<16x256xbf16>
    %c0_6 = arith.constant 0 : index
    %c0_7 = arith.constant 0 : index
    %9 = vector.load %arg4[%c0_6, %c0_7] : memref<256x128xbf16, #tpu.memory_space<vmem>>, vector<256x128xbf16>
    %cst_8 = arith.constant dense<0.000000e+00> : vector<16x128xf32>
    %10 = tpu.matmul %8, %9, %cst_8 {dimension_numbers = #tpu.dot_dimension_numbers<[1], [0], [0], [1], [0, 0, 1, 1], [], []>} : vector<16x256xbf16>, vector<256x128xbf16>, vector<16x128xf32> -> vector<16x128xf32>
    %c0_9 = arith.constant 0 : index
    %c0_10 = arith.constant 0 : index
    %11 = vector.load %arg5[%c0_9, %c0_10] : memref<1x128xf32, #tpu.memory_space<vmem>>, vector<1x128xf32>
    %12 = vector.broadcast %11 : vector<1x128xf32> to vector<16x128xf32>
    %13 = arith.addf %10, %12 : vector<16x128xf32>
    %cst_11 = arith.constant 0.000000e+00 : f32
    %14 = vector.broadcast %cst_11 : f32 to vector<16x128xf32>
    %15 = arith.maximumf %13, %14 : vector<16x128xf32>
    %c0_12 = arith.constant 0 : index
    %c0_13 = arith.constant 0 : index
    %16 = vector.load %arg6[%c0_12, %c0_13] : memref<128x128xf32, #tpu.memory_space<vmem>>, vector<128x128xf32>
    %cst_14 = arith.constant dense<0.000000e+00> : vector<16x128xf32>
    %17 = tpu.matmul %15, %16, %cst_14 {dimension_numbers = #tpu.dot_dimension_numbers<[1], [0], [0], [1], [0, 0, 1, 1], [], []>} : vector<16x128xf32>, vector<128x128xf32>, vector<16x128xf32> -> vector<16x128xf32>
    %c0_15 = arith.constant 0 : index
    %c0_16 = arith.constant 0 : index
    %18 = vector.load %arg7[%c0_15, %c0_16] : memref<1x128xf32, #tpu.memory_space<vmem>>, vector<1x128xf32>
    %19 = vector.broadcast %18 : vector<1x128xf32> to vector<16x128xf32>
    %20 = arith.addf %17, %19 : vector<16x128xf32>
    %c0_17 = arith.constant 0 : index
    %c0_18 = arith.constant 0 : index
    %21 = vector.load %arg8[%c0_17, %c0_18] : memref<16x128xf32, #tpu.memory_space<vmem>>, vector<16x128xf32>
    tpu.vector_store %arg8[%c0_17, %c0_18], %20 {strides = array<i32>} : memref<16x128xf32, #tpu.memory_space<vmem>>, vector<16x128xf32>,
    return
  }
  func.func @transform_0(%arg0: i32) -> (i32, i32) {
    %c0_i32 = arith.constant 0 : i32
    %c0_i32_0 = arith.constant 0 : i32
    return %arg0, %c0_i32 : i32, i32
  }
  func.func @transform_1(%arg0: i32) -> (i32, i32) {
    %c0_i32 = arith.constant 0 : i32
    %c0_i32_0 = arith.constant 0 : i32
    %c0_i32_1 = arith.constant 0 : i32
    return %c0_i32, %c0_i32_0 : i32, i32
  }
  func.func @transform_2(%arg0: i32) -> (i32, i32) {
    %c0_i32 = arith.constant 0 : i32
    %c0_i32_0 = arith.constant 0 : i32
    %c0_i32_1 = arith.constant 0 : i32
    return %c0_i32, %c0_i32_0 : i32, i32
  }
  func.func @transform_3(%arg0: i32) -> (i32, i32) {
    %c0_i32 = arith.constant 0 : i32
    %c0_i32_0 = arith.constant 0 : i32
    %c0_i32_1 = arith.constant 0 : i32
    return %c0_i32, %c0_i32_0 : i32, i32
  }
  func.func @transform_4(%arg0: i32) -> (i32, i32) {
    %c0_i32 = arith.constant 0 : i32
    %c0_i32_0 = arith.constant 0 : i32
    %c0_i32_1 = arith.constant 0 : i32
    return %c0_i32, %c0_i32_0 : i32, i32
  }
  func.func @transform_5(%arg0: i32) -> (i32, i32) {
    %c0_i32 = arith.constant 0 : i32
    %c0_i32_0 = arith.constant 0 : i32
    %c0_i32_1 = arith.constant 0 : i32
    return %c0_i32, %c0_i32_0 : i32, i32
  }
  func.func @transform_6(%arg0: i32) -> (i32, i32) {
    %c0_i32 = arith.constant 0 : i32
    %c0_i32_0 = arith.constant 0 : i32
    %c0_i32_1 = arith.constant 0 : i32
    return %c0_i32, %c0_i32_0 : i32, i32
  }
  func.func @transform_7(%arg0: i32) -> (i32, i32) {
    %c0_i32 = arith.constant 0 : i32
    %c0_i32_0 = arith.constant 0 : i32
    return %arg0, %c0_i32 : i32, i32
  }
}

</mosaic_0001>

<llo_original>
// kernel: tpu_custom_call.1
$region0: #{tpu_custom_call.1}
  #allocation0 [shape = 'u32[]', space=smem, size = 0x4, offset = 0x4, fixed_abs, tag = 'smem constant byte address 0x4 - core index']
  #allocation1 [shape = 'u32[144,128]{1,0:T(1,128)}', space=vmem, size = 0x12000, scoped, tag = 'internal scratch']
  %s0 = inlined_call_operand.hbm [shape: bf16[2,768], index: 0, kind: input, shape index: {}]
  %s1 = inlined_call_operand.hbm [shape: bf16[768,256], index: 1, kind: input, shape index: {}]
  %s2 = inlined_call_operand.vmem [shape: f32[1,256], index: 2, kind: input, shape index: {}]
  %s3 = inlined_call_operand.hbm [shape: bf16[256,128], index: 3, kind: input, shape index: {}]
  %s4 = inlined_call_operand.vmem [shape: f32[1,128], index: 4, kind: input, shape index: {}]
  %s5 = inlined_call_operand.hbm [shape: f32[128,128], index: 5, kind: input, shape index: {}]
  %s6 = inlined_call_operand.vmem [shape: f32[1,128], index: 6, kind: input, shape index: {}]
  %s7 = inlined_call_operand.hbm [shape: f32[2,128], index: 7, kind: output, shape index: {}]
  %s8 = sld [smem:[#allocation0]]
  $region54: #{tpu_custom_call.1} parent=0
    _
  %s10 = ssub.s32 1, %s8
  %s11 = scalar_select 0, %s10, %s8
  $region1: #{tpu_custom_call.1} parent=0
    #allocation2 [shape = 'u8[24576]{0}', space=vmem, size = 0x6000, scoped, tag = 'input window, operand 0, single buffered']
    #allocation3 [shape = 's32[1]{0}', space=sflag, size = 0x4, scoped, tag = 'scoped memory for tpu_custom_call.1']
    #allocation4 [shape = 's32[1]{0}', space=sflag, size = 0x4, scoped, tag = 'scoped memory for tpu_custom_call.1']
    #allocation5 [shape = 'u8[393216]{0}', space=vmem, size = 0x60000, scoped, tag = 'input window, operand 1, single buffered']
    #allocation6 [shape = 's32[1]{0}', space=sflag, size = 0x4, scoped, tag = 'scoped memory for tpu_custom_call.1']
    #allocation7 [shape = 'u8[65536]{0}', space=vmem, size = 0x10000, scoped, tag = 'input window, operand 3, single buffered']
    #allocation8 [shape = 'u8[65536]{0}', space=vmem, size = 0x10000, scoped, tag = 'input window, operand 5, single buffered']
    #allocation9 [shape = 's32[1]{0}', space=sflag, size = 0x4, scoped, tag = 'scoped memory for tpu_custom_call.1']
    #allocation10 [shape = 'u8[8192]{0}', space=vmem, size = 0x2000, scoped, tag = 'output window, operand 0, single buffered']
    %12 = vsyncpa [#allocation3], 0
    %13 = vsyncpa [#allocation6], 0
    %14 = vsyncpa [#allocation9], 0
    %15 = vsyncpa [#allocation4], 0
    // Predicated region
    $region2: #{tpu_custom_call.1} parent=1 // pred_check
      _
    $region3: #{tpu_custom_call.1} parent=1 // pred_check_branch
      %17 = sbr.rel (0) target = $region5
    $region4: #{tpu_custom_call.1} parent=1 // pred_region
      %s19 = ssub.s32 768, 96
      %20 = vsyncadd [#allocation3], %s19
      %s21 = sshll.u32 [#allocation2], 4
      %s22 = int_to_ptr.vmem [resolvable:$true] %s21
      %27 = dma.hbm_to_vmem [thread:$0]  %s0, 96, %s22, [#allocation3], 96, 96, 6
    $region5: #{tpu_custom_call.1} parent=1 // pred_fallthru
      _
    // Predicated region
    $region6: #{tpu_custom_call.1} parent=1 // pred_check
      _
    $region7: #{tpu_custom_call.1} parent=1 // pred_check_branch
      %29 = sbr.rel (0) target = $region9
    $region8: #{tpu_custom_call.1} parent=1 // pred_region
      %s31 = ssub.s32 12288, 12288
      %32 = vsyncadd [#allocation6], %s31
      %s33 = sshll.u32 [#allocation5], 4
      %s34 = int_to_ptr.vmem [resolvable:$true] %s33
      %39 = dma.hbm_to_vmem [thread:$0]  %s1, 12288, %s34, [#allocation6], 128, 128, 8
    $region9: #{tpu_custom_call.1} parent=1 // pred_fallthru
      _
    // Predicated region
    $region10: #{tpu_custom_call.1} parent=1 // pred_check
      _
    $region11: #{tpu_custom_call.1} parent=1 // pred_check_branch
      %41 = sbr.rel (0) target = $region13
    $region12: #{tpu_custom_call.1} parent=1 // pred_region
      _
    $region13: #{tpu_custom_call.1} parent=1 // pred_fallthru
      _
    // Predicated region
    $region14: #{tpu_custom_call.1} parent=1 // pred_check
      _
    $region15: #{tpu_custom_call.1} parent=1 // pred_check_branch
      %43 = sbr.rel (0) target = $region17
    $region16: #{tpu_custom_call.1} parent=1 // pred_region
      %s45 = ssub.s32 2048, 2048
      %46 = vsyncadd [#allocation6], %s45
      %s47 = sshll.u32 [#allocation7], 4
      %s48 = int_to_ptr.vmem [resolvable:$true] %s47
      %53 = dma.hbm_to_vmem [thread:$0]  %s3, 2048, %s48, [#allocation6], 64, 64, 4
    $region17: #{tpu_custom_call.1} parent=1 // pred_fallthru
      _
    // Predicated region
    $region18: #{tpu_custom_call.1} parent=1 // pred_check
      _
    $region19: #{tpu_custom_call.1} parent=1 // pred_check_branch
      %55 = sbr.rel (0) target = $region21
    $region20: #{tpu_custom_call.1} parent=1 // pred_region
      _
    $region21: #{tpu_custom_call.1} parent=1 // pred_fallthru
      _
    // Predicated region
    $region22: #{tpu_custom_call.1} parent=1 // pred_check
      _
    $region23: #{tpu_custom_call.1} parent=1 // pred_check_branch
      %57 = sbr.rel (0) target = $region25
    $region24: #{tpu_custom_call.1} parent=1 // pred_region
      %s59 = ssub.s32 2048, 2048
      %60 = vsyncadd [#allocation9], %s59
      %s61 = sshll.u32 [#allocation8], 4
      %s62 = int_to_ptr.vmem [resolvable:$true] %s61
      %67 = dma.hbm_to_vmem [thread:$0]  %s5, 2048, %s62, [#allocation9], 128, 128, 8
    $region25: #{tpu_custom_call.1} parent=1 // pred_fallthru
      _
    // Predicated region
    $region26: #{tpu_custom_call.1} parent=1 // pred_check
      _
    $region27: #{tpu_custom_call.1} parent=1 // pred_check_branch
      %69 = sbr.rel (0) target = $region29
    $region28: #{tpu_custom_call.1} parent=1 // pred_region
      _
    $region29: #{tpu_custom_call.1} parent=1 // pred_fallthru
      _
    // Predicated region
    $region30: #{tpu_custom_call.1} parent=1 // pred_check
      _
    $region31: #{tpu_custom_call.1} parent=1 // pred_check_branch
      %71 = sbr.rel (0) target = $region33
    $region32: #{tpu_custom_call.1} parent=1 // pred_region
      %72 = dma.done [#allocation3], 768
    $region33: #{tpu_custom_call.1} parent=1 // pred_fallthru
      _
    // Predicated region
    $region34: #{tpu_custom_call.1} parent=1 // pred_check
      _
    $region35: #{tpu_custom_call.1} parent=1 // pred_check_branch
      %74 = sbr.rel (0) target = $region37
    $region36: #{tpu_custom_call.1} parent=1 // pred_region
      %75 = dma.done [#allocation6], 12288
    $region37: #{tpu_custom_call.1} parent=1 // pred_fallthru
      _
    // Predicated region
    $region38: #{tpu_custom_call.1} parent=1 // pred_check
      _
    $region39: #{tpu_custom_call.1} parent=1 // pred_check_branch
      %77 = sbr.rel (0) target = $region41
    $region40: #{tpu_custom_call.1} parent=1 // pred_region
      %78 = dma.done [#allocation6], 2048
    $region41: #{tpu_custom_call.1} parent=1 // pred_fallthru
      _
    // Predicated region
    $region42: #{tpu_custom_call.1} parent=1 // pred_check
      _
    $region43: #{tpu_custom_call.1} parent=1 // pred_check_branch
      %80 = sbr.rel (0) target = $region45
    $region44: #{tpu_custom_call.1} parent=1 // pred_region
      %81 = dma.done [#allocation9], 2048
    $region45: #{tpu_custom_call.1} parent=1 // pred_fallthru
      _
    %v83 = vld [vmem:[#allocation2] sm:$0x3f]
    %v84 = vld [vmem:[#allocation2 + $0x6] sm:$0x3f]
    %v85 = vld [vmem:[#allocation2 + $0xc] sm:$0x3f]
    %v86 = vld [vmem:[#allocation2 + $0x12] sm:$0x3f]
    %v87 = vld [vmem:[#allocation2 + $0x18] sm:$0x3f]
    %v88 = vld [vmem:[#allocation2 + $0x1e] sm:$0x3f]
    %v89 = vld [vmem:[#allocation2 + $0x24] sm:$0x3f]
    %v90 = vld [vmem:[#allocation2 + $0x2a] sm:$0x3f]
    %v91 = vld [vmem:[#allocation5] sm:$0xff]
    %v92 = vld [vmem:[#allocation5 + $0x8] sm:$0xff]
    %v93 = vld [vmem:[#allocation5 + $0x10] sm:$0xff]
    %v94 = vld [vmem:[#allocation5 + $0x18] sm:$0xff]
    %v95 = vld [vmem:[#allocation5 + $0x20] sm:$0xff]
    %v96 = vld [vmem:[#allocation5 + $0x28] sm:$0xff]
    %v97 = vld [vmem:[#allocation5 + $0x30] sm:$0xff]
    %v98 = vld [vmem:[#allocation5 + $0x38] sm:$0xff]
    %v99 = vld [vmem:[#allocation5 + $0x40] sm:$0xff]
    %v100 = vld [vmem:[#allocation5 + $0x48] sm:$0xff]
    %v101 = vld [vmem:[#allocation5 + $0x50] sm:$0xff]
    %v102 = vld [vmem:[#allocation5 + $0x58] sm:$0xff]
    %v103 = vld [vmem:[#allocation5 + $0x60] sm:$0xff]
    %v104 = vld [vmem:[#allocation5 + $0x68] sm:$0xff]
    %v105 = vld [vmem:[#allocation5 + $0x70] sm:$0xff]
    %v106 = vld [vmem:[#allocation5 + $0x78] sm:$0xff]
    %v107 = vld [vmem:[#allocation5 + $0x80] sm:$0xff]
    %v108 = vld [vmem:[#allocation5 + $0x88] sm:$0xff]
    %v109 = vld [vmem:[#allocation5 + $0x90] sm:$0xff]
    %v110 = vld [vmem:[#allocation5 + $0x98] sm:$0xff]
    %v111 = vld [vmem:[#allocation5 + $0xa0] sm:$0xff]
    %v112 = vld [vmem:[#allocation5 + $0xa8] sm:$0xff]
    %v113 = vld [vmem:[#allocation5 + $0xb0] sm:$0xff]
    %v114 = vld [vmem:[#allocation5 + $0xb8] sm:$0xff]
    %v115 = vld [vmem:[#allocation5 + $0xc0] sm:$0xff]
    %v116 = vld [vmem:[#allocation5 + $0xc8] sm:$0xff]
    %v117 = vld [vmem:[#allocation5 + $0xd0] sm:$0xff]
    %v118 = vld [vmem:[#allocation5 + $0xd8] sm:$0xff]
    %v119 = vld [vmem:[#allocation5 + $0xe0] sm:$0xff]
    %v120 = vld [vmem:[#allocation5 + $0xe8] sm:$0xff]
    %v121 = vld [vmem:[#allocation5 + $0xf0] sm:$0xff]
    %v122 = vld [vmem:[#allocation5 + $0xf8] sm:$0xff]
    %v123 = vld [vmem:[#allocation5 + $0x100] sm:$0xff]
    %v124 = vld [vmem:[#allocation5 + $0x108] sm:$0xff]
    %v125 = vld [vmem:[#allocation5 + $0x110] sm:$0xff]
    %v126 = vld [vmem:[#allocation5 + $0x118] sm:$0xff]
    %v127 = vld [vmem:[#allocation5 + $0x120] sm:$0xff]
    %v128 = vld [vmem:[#allocation5 + $0x128] sm:$0xff]
    %v129 = vld [vmem:[#allocation5 + $0x130] sm:$0xff]
    %v130 = vld [vmem:[#allocation5 + $0x138] sm:$0xff]
    %v131 = vld [vmem:[#allocation5 + $0x140] sm:$0xff]
    %v132 = vld [vmem:[#allocation5 + $0x148] sm:$0xff]
    %v133 = vld [vmem:[#allocation5 + $0x150] sm:$0xff]
    %v134 = vld [vmem:[#allocation5 + $0x158] sm:$0xff]
    %v135 = vld [vmem:[#allocation5 + $0x160] sm:$0xff]
    %v136 = vld [vmem:[#allocation5 + $0x168] sm:$0xff]
    %v137 = vld [vmem:[#allocation5 + $0x170] sm:$0xff]
    %v138 = vld [vmem:[#allocation5 + $0x178] sm:$0xff]
    %v139 = vld [vmem:[#allocation5 + $0x180] sm:$0xff]
    %v140 = vld [vmem:[#allocation5 + $0x188] sm:$0xff]
    %v141 = vld [vmem:[#allocation5 + $0x190] sm:$0xff]
    %v142 = vld [vmem:[#allocation5 + $0x198] sm:$0xff]
    %v143 = vld [vmem:[#allocation5 + $0x1a0] sm:$0xff]
    %v144 = vld [vmem:[#allocation5 + $0x1a8] sm:$0xff]
    %v145 = vld [vmem:[#allocation5 + $0x1b0] sm:$0xff]
    %v146 = vld [vmem:[#allocation5 + $0x1b8] sm:$0xff]
    %v147 = vld [vmem:[#allocation5 + $0x1c0] sm:$0xff]
    %v148 = vld [vmem:[#allocation5 + $0x1c8] sm:$0xff]
    %v149 = vld [vmem:[#allocation5 + $0x1d0] sm:$0xff]
    %v150 = vld [vmem:[#allocation5 + $0x1d8] sm:$0xff]
    %v151 = vld [vmem:[#allocation5 + $0x1e0] sm:$0xff]
    %v152 = vld [vmem:[#allocation5 + $0x1e8] sm:$0xff]
    %v153 = vld [vmem:[#allocation5 + $0x1f0] sm:$0xff]
    %v154 = vld [vmem:[#allocation5 + $0x1f8] sm:$0xff]
    %v155 = vld [vmem:[#allocation5 + $0x200] sm:$0xff]
    %v156 = vld [vmem:[#allocation5 + $0x208] sm:$0xff]
    %v157 = vld [vmem:[#allocation5 + $0x210] sm:$0xff]
    %v158 = vld [vmem:[#allocation5 + $0x218] sm:$0xff]
    %v159 = vld [vmem:[#allocation5 + $0x220] sm:$0xff]
    %v160 = vld [vmem:[#allocation5 + $0x228] sm:$0xff]
    %v161 = vld [vmem:[#allocation5 + $0x230] sm:$0xff]
    %v162 = vld [vmem:[#allocation5 + $0x238] sm:$0xff]
    %v163 = vld [vmem:[#allocation5 + $0x240] sm:$0xff]
    %v164 = vld [vmem:[#allocation5 + $0x248] sm:$0xff]
    %v165 = vld [vmem:[#allocation5 + $0x250] sm:$0xff]
    %v166 = vld [vmem:[#allocation5 + $0x258] sm:$0xff]
    %v167 = vld [vmem:[#allocation5 + $0x260] sm:$0xff]
    %v168 = vld [vmem:[#allocation5 + $0x268] sm:$0xff]
    %v169 = vld [vmem:[#allocation5 + $0x270] sm:$0xff]
    %v170 = vld [vmem:[#allocation5 + $0x278] sm:$0xff]
    %v171 = vld [vmem:[#allocation5 + $0x280] sm:$0xff]
    %v172 = vld [vmem:[#allocation5 + $0x288] sm:$0xff]
    %v173 = vld [vmem:[#allocation5 + $0x290] sm:$0xff]
    %v174 = vld [vmem:[#allocation5 + $0x298] sm:$0xff]
    %v175 = vld [vmem:[#allocation5 + $0x2a0] sm:$0xff]
    %v176 = vld [vmem:[#allocation5 + $0x2a8] sm:$0xff]
    %v177 = vld [vmem:[#allocation5 + $0x2b0] sm:$0xff]
    %v178 = vld [vmem:[#allocation5 + $0x2b8] sm:$0xff]
    %v179 = vld [vmem:[#allocation5 + $0x2c0] sm:$0xff]
    %v180 = vld [vmem:[#allocation5 + $0x2c8] sm:$0xff]
    %v181 = vld [vmem:[#allocation5 + $0x2d0] sm:$0xff]
    %v182 = vld [vmem:[#allocation5 + $0x2d8] sm:$0xff]
    %v183 = vld [vmem:[#allocation5 + $0x2e0] sm:$0xff]
    %v184 = vld [vmem:[#allocation5 + $0x2e8] sm:$0xff]
    %v185 = vld [vmem:[#allocation5 + $0x2f0] sm:$0xff]
    %v186 = vld [vmem:[#allocation5 + $0x2f8] sm:$0xff]
    %v187 = vld [vmem:[%s2] sm:$0x3]
    %v189 = vlaneseq
    %v190 = vshrl.u32 %v189, 7
    %v191 = vsub.s32 0, %v190
    %v192 = vrot.slane %v187, %v191
    %v193 = vlaneseq
    %v194 = vshrl.u32 %v193, 7
    %v195 = vsub.s32 1, %v194
    %v196 = vrot.slane %v187, %v195
    %v207 = vcombine.low %v83, %v84
    %v208 = vcombine.high %v83, %v84
    %v209 = vcombine.low %v85, %v86
    %v210 = vcombine.high %v85, %v86
    %v211 = vcombine.low %v87, %v88
    %v212 = vcombine.high %v87, %v88
    %v213 = vcombine.low %v89, %v90
    %v214 = vcombine.high %v89, %v90
    %v216 = vunpack.c.l.s4 1966171168
    %v217 = vunpack.c.0.s8 %v216
    %v218 = vlaneseq
    %v219 = vshrl.u32 %v218, 7
    %v220 = vsub.s32 %v217, %v219
    %v221 = vrot.slane %v207, %v220
    %v223 = vunpack.c.l.s4 1966171168
    %v224 = vunpack.c.0.s8 %v223
    %v225 = vlaneseq
    %v226 = vshrl.u32 %v225, 7
    %v227 = vsub.s32 %v224, %v226
    %v228 = vrot.slane %v208, %v227
    %v230 = vunpack.c.l.s4 1966171168
    %v231 = vunpack.c.0.s8 %v230
    %v232 = vlaneseq
    %v233 = vshrl.u32 %v232, 7
    %v234 = vsub.s32 %v231, %v233
    %v235 = vrot.slane %v209, %v234
    %v237 = vunpack.c.l.s4 1966171168
    %v238 = vunpack.c.0.s8 %v237
    %v239 = vlaneseq
    %v240 = vshrl.u32 %v239, 7
    %v241 = vsub.s32 %v238, %v240
    %v242 = vrot.slane %v210, %v241
    %v244 = vunpack.c.l.s4 1966171168
    %v245 = vunpack.c.0.s8 %v244
    %v246 = vlaneseq
    %v247 = vshrl.u32 %v246, 7
    %v248 = vsub.s32 %v245, %v247
    %v249 = vrot.slane %v211, %v248
    %v251 = vunpack.c.l.s4 1966171168
    %v252 = vunpack.c.0.s8 %v251
    %v253 = vlaneseq
    %v254 = vshrl.u32 %v253, 7
    %v255 = vsub.s32 %v252, %v254
    %v256 = vrot.slane %v212, %v255
    %v258 = vunpack.c.l.s4 1966171168
    %v259 = vunpack.c.0.s8 %v258
    %v260 = vlaneseq
    %v261 = vshrl.u32 %v260, 7
    %v262 = vsub.s32 %v259, %v261
    %v263 = vrot.slane %v213, %v262
    %v265 = vunpack.c.l.s4 1966171168
    %v266 = vunpack.c.0.s8 %v265
    %v267 = vlaneseq
    %v268 = vshrl.u32 %v267, 7
    %v269 = vsub.s32 %v266, %v268
    %v270 = vrot.slane %v214, %v269
    %v271 = vcombine.low %v221, %v235
    %v272 = vcombine.high %v221, %v235
    %v273 = vcombine.low %v228, %v242
    %v274 = vcombine.high %v228, %v242
    %v275 = vcombine.low %v249, %v263
    %v276 = vcombine.high %v249, %v263
    %v277 = vcombine.low %v256, %v270
    %v278 = vcombine.high %v256, %v270
    %v280 = vunpack.c.l.s4 1966171168
    %v281 = vunpack.c.0.s8 %v280
    %v282 = vlaneseq
    %v283 = vshrl.u32 %v282, 7
    %v284 = vsub.s32 %v281, %v283
    %v285 = vrot.slane %v271, %v284
    %v287 = vunpack.c.l.s4 1966171168
    %v288 = vunpack.c.0.s8 %v287
    %v289 = vlaneseq
    %v290 = vshrl.u32 %v289, 7
    %v291 = vsub.s32 %v288, %v290
    %v292 = vrot.slane %v273, %v291
    %v294 = vunpack.c.l.s4 1966171168
    %v295 = vunpack.c.0.s8 %v294
    %v296 = vlaneseq
    %v297 = vshrl.u32 %v296, 7
    %v298 = vsub.s32 %v295, %v297
    %v299 = vrot.slane %v272, %v298
    %v301 = vunpack.c.l.s4 1966171168
    %v302 = vunpack.c.0.s8 %v301
    %v303 = vlaneseq
    %v304 = vshrl.u32 %v303, 7
    %v305 = vsub.s32 %v302, %v304
    %v306 = vrot.slane %v274, %v305
    %v308 = vunpack.c.l.s4 1966171168
    %v309 = vunpack.c.0.s8 %v308
    %v310 = vlaneseq
    %v311 = vshrl.u32 %v310, 7
    %v312 = vsub.s32 %v309, %v311
    %v313 = vrot.slane %v275, %v312
    %v315 = vunpack.c.l.s4 1966171168
    %v316 = vunpack.c.0.s8 %v315
    %v317 = vlaneseq
    %v318 = vshrl.u32 %v317, 7
    %v319 = vsub.s32 %v316, %v318
    %v320 = vrot.slane %v277, %v319
    %v322 = vunpack.c.l.s4 1966171168
    %v323 = vunpack.c.0.s8 %v322
    %v324 = vlaneseq
    %v325 = vshrl.u32 %v324, 7
    %v326 = vsub.s32 %v323, %v325
    %v327 = vrot.slane %v276, %v326
    %v329 = vunpack.c.l.s4 1966171168
    %v330 = vunpack.c.0.s8 %v329
    %v331 = vlaneseq
    %v332 = vshrl.u32 %v331, 7
    %v333 = vsub.s32 %v330, %v332
    %v334 = vrot.slane %v278, %v333
    %v335 = vcombine.low %v285, %v313
    %v336 = vcombine.high %v285, %v313
    %v337 = vcombine.low %v292, %v320
    %v338 = vcombine.low %v299, %v327
    %v339 = vcombine.high %v299, %v327
    %v340 = vcombine.low %v306, %v334
    %v443 = vunpack.c.l.b16 %v91
    %v444 = vunpack.c.h.b16 %v91
    %v445 = vunpack.c.l.b16 %v92
    %v446 = vunpack.c.h.b16 %v92
    %v447 = vunpack.c.l.b16 %v93
    %v448 = vunpack.c.h.b16 %v93
    %v449 = vunpack.c.l.b16 %v94
    %v450 = vunpack.c.h.b16 %v94
    %v451 = vunpack.c.l.b16 %v95
    %v452 = vunpack.c.h.b16 %v95
    %v453 = vunpack.c.l.b16 %v96
    %v454 = vunpack.c.h.b16 %v96
    %v455 = vunpack.c.l.b16 %v97
    %v456 = vunpack.c.h.b16 %v97
    %v457 = vunpack.c.l.b16 %v98
    %v458 = vunpack.c.h.b16 %v98
    %v459 = vunpack.c.l.b16 %v99
    %v460 = vunpack.c.h.b16 %v99
    %v461 = vunpack.c.l.b16 %v100
    %v462 = vunpack.c.h.b16 %v100
    %v463 = vunpack.c.l.b16 %v101
    %v464 = vunpack.c.h.b16 %v101
    %v465 = vunpack.c.l.b16 %v102
    %v466 = vunpack.c.h.b16 %v102
    %v467 = vunpack.c.l.b16 %v103
    %v468 = vunpack.c.h.b16 %v103
    %v469 = vunpack.c.l.b16 %v104
    %v470 = vunpack.c.h.b16 %v104
    %v471 = vunpack.c.l.b16 %v105
    %v472 = vunpack.c.h.b16 %v105
    %v473 = vunpack.c.l.b16 %v106
    %v474 = vunpack.c.h.b16 %v106
    %v475 = vunpack.c.l.b16 %v107
    %v476 = vunpack.c.h.b16 %v107
    %v477 = vunpack.c.l.b16 %v108
    %v478 = vunpack.c.h.b16 %v108
    %v479 = vunpack.c.l.b16 %v109
    %v480 = vunpack.c.h.b16 %v109
    %v481 = vunpack.c.l.b16 %v110
    %v482 = vunpack.c.h.b16 %v110
    %v483 = vunpack.c.l.b16 %v111
    %v484 = vunpack.c.h.b16 %v111
    %v485 = vunpack.c.l.b16 %v112
    %v486 = vunpack.c.h.b16 %v112
    %v487 = vunpack.c.l.b16 %v113
    %v488 = vunpack.c.h.b16 %v113
    %v489 = vunpack.c.l.b16 %v114
    %v490 = vunpack.c.h.b16 %v114
    %v491 = vunpack.c.l.b16 %v115
    %v492 = vunpack.c.h.b16 %v115
    %v493 = vunpack.c.l.b16 %v116
    %v494 = vunpack.c.h.b16 %v116
    %v495 = vunpack.c.l.b16 %v117
    %v496 = vunpack.c.h.b16 %v117
    %v497 = vunpack.c.l.b16 %v118
    %v498 = vunpack.c.h.b16 %v118
    %v499 = vunpack.c.l.b16 %v119
    %v500 = vunpack.c.h.b16 %v119
    %v501 = vunpack.c.l.b16 %v120
    %v502 = vunpack.c.h.b16 %v120
    %v503 = vunpack.c.l.b16 %v121
    %v504 = vunpack.c.h.b16 %v121
    %v505 = vunpack.c.l.b16 %v122
    %v506 = vunpack.c.h.b16 %v122
    %v507 = vunpack.c.l.b16 %v123
    %v508 = vunpack.c.h.b16 %v123
    %v509 = vunpack.c.l.b16 %v124
    %v510 = vunpack.c.h.b16 %v124
    %v511 = vunpack.c.l.b16 %v125
    %v512 = vunpack.c.h.b16 %v125
    %v513 = vunpack.c.l.b16 %v126
    %v514 = vunpack.c.h.b16 %v126
    %v515 = vunpack.c.l.b16 %v127
    %v516 = vunpack.c.h.b16 %v127
    %v517 = vunpack.c.l.b16 %v128
    %v518 = vunpack.c.h.b16 %v128
    %v519 = vunpack.c.l.b16 %v129
    %v520 = vunpack.c.h.b16 %v129
    %v521 = vunpack.c.l.b16 %v130
    %v522 = vunpack.c.h.b16 %v130
    %v523 = vunpack.c.l.b16 %v131
    %v524 = vunpack.c.h.b16 %v131
    %v525 = vunpack.c.l.b16 %v132
    %v526 = vunpack.c.h.b16 %v132
    %v527 = vunpack.c.l.b16 %v133
    %v528 = vunpack.c.h.b16 %v133
    %v529 = vunpack.c.l.b16 %v134
    %v530 = vunpack.c.h.b16 %v134
    %v531 = vunpack.c.l.b16 %v135
    %v532 = vunpack.c.h.b16 %v135
    %v533 = vunpack.c.l.b16 %v136
    %v534 = vunpack.c.h.b16 %v136
    %v535 = vunpack.c.l.b16 %v137
    %v536 = vunpack.c.h.b16 %v137
    %v537 = vunpack.c.l.b16 %v138
    %v538 = vunpack.c.h.b16 %v138
    %v539 = vunpack.c.l.b16 %v139
    %v540 = vunpack.c.h.b16 %v139
    %v541 = vunpack.c.l.b16 %v140
    %v542 = vunpack.c.h.b16 %v140
    %v543 = vunpack.c.l.b16 %v141
    %v544 = vunpack.c.h.b16 %v141
    %v545 = vunpack.c.l.b16 %v142
    %v546 = vunpack.c.h.b16 %v142
    %v547 = vunpack.c.l.b16 %v143
    %v548 = vunpack.c.h.b16 %v143
    %v549 = vunpack.c.l.b16 %v144
    %v550 = vunpack.c.h.b16 %v144
    %v551 = vunpack.c.l.b16 %v145
    %v552 = vunpack.c.h.b16 %v145
    %v553 = vunpack.c.l.b16 %v146
    %v554 = vunpack.c.h.b16 %v146
    %v555 = vunpack.c.l.b16 %v147
    %v556 = vunpack.c.h.b16 %v147
    %v557 = vunpack.c.l.b16 %v148
    %v558 = vunpack.c.h.b16 %v148
    %v559 = vunpack.c.l.b16 %v149
    %v560 = vunpack.c.h.b16 %v149
    %v561 = vunpack.c.l.b16 %v150
    %v562 = vunpack.c.h.b16 %v150
    %v563 = vunpack.c.l.b16 %v151
    %v564 = vunpack.c.h.b16 %v151
    %v565 = vunpack.c.l.b16 %v152
    %v566 = vunpack.c.h.b16 %v152
    %v567 = vunpack.c.l.b16 %v153
    %v568 = vunpack.c.h.b16 %v153
    %v569 = vunpack.c.l.b16 %v154
    %v570 = vunpack.c.h.b16 %v154
    %v571 = vunpack.c.l.b16 %v155
    %v572 = vunpack.c.h.b16 %v155
    %v573 = vunpack.c.l.b16 %v156
    %v574 = vunpack.c.h.b16 %v156
    %v575 = vunpack.c.l.b16 %v157
    %v576 = vunpack.c.h.b16 %v157
    %v577 = vunpack.c.l.b16 %v158
    %v578 = vunpack.c.h.b16 %v158
    %v579 = vunpack.c.l.b16 %v159
    %v580 = vunpack.c.h.b16 %v159
    %v581 = vunpack.c.l.b16 %v160
    %v582 = vunpack.c.h.b16 %v160
    %v583 = vunpack.c.l.b16 %v161
    %v584 = vunpack.c.h.b16 %v161
    %v585 = vunpack.c.l.b16 %v162
    %v586 = vunpack.c.h.b16 %v162
    %v587 = vunpack.c.l.b16 %v163
    %v588 = vunpack.c.h.b16 %v163
    %v589 = vunpack.c.l.b16 %v164
    %v590 = vunpack.c.h.b16 %v164
    %v591 = vunpack.c.l.b16 %v165
    %v592 = vunpack.c.h.b16 %v165
    %v593 = vunpack.c.l.b16 %v166
    %v594 = vunpack.c.h.b16 %v166
    %v595 = vunpack.c.l.b16 %v167
    %v596 = vunpack.c.h.b16 %v167
    %v597 = vunpack.c.l.b16 %v168
    %v598 = vunpack.c.h.b16 %v168
    %v599 = vunpack.c.l.b16 %v169
    %v600 = vunpack.c.h.b16 %v169
    %v601 = vunpack.c.l.b16 %v170
    %v602 = vunpack.c.h.b16 %v170
    %v603 = vunpack.c.l.b16 %v171
    %v604 = vunpack.c.h.b16 %v171
    %v605 = vunpack.c.l.b16 %v172
    %v606 = vunpack.c.h.b16 %v172
    %v607 = vunpack.c.l.b16 %v173
    %v608 = vunpack.c.h.b16 %v173
    %v609 = vunpack.c.l.b16 %v174
    %v610 = vunpack.c.h.b16 %v174
    %v611 = vunpack.c.l.b16 %v175
    %v612 = vunpack.c.h.b16 %v175
    %v613 = vunpack.c.l.b16 %v176
    %v614 = vunpack.c.h.b16 %v176
    %v615 = vunpack.c.l.b16 %v177
    %v616 = vunpack.c.h.b16 %v177
    %v617 = vunpack.c.l.b16 %v178
    %v618 = vunpack.c.h.b16 %v178
    %v619 = vunpack.c.l.b16 %v179
    %v620 = vunpack.c.h.b16 %v179
    %v621 = vunpack.c.l.b16 %v180
    %v622 = vunpack.c.h.b16 %v180
    %v623 = vunpack.c.l.b16 %v181
    %v624 = vunpack.c.h.b16 %v181
    %v625 = vunpack.c.l.b16 %v182
    %v626 = vunpack.c.h.b16 %v182
    %v627 = vunpack.c.l.b16 %v183
    %v628 = vunpack.c.h.b16 %v183
    %v629 = vunpack.c.l.b16 %v184
    %v630 = vunpack.c.h.b16 %v184
    %v631 = vunpack.c.l.b16 %v185
    %v632 = vunpack.c.h.b16 %v185
    %v633 = vunpack.c.l.b16 %v186
    %v634 = vunpack.c.h.b16 %v186
    %v635 = vpack.c.b16 %v445, %v443
    %v636 = vpack.c.b16 %v446, %v444
    %v637 = vpack.c.b16 %v449, %v447
    %v638 = vpack.c.b16 %v450, %v448
    %v639 = vpack.c.b16 %v453, %v451
    %v640 = vpack.c.b16 %v454, %v452
    %v641 = vpack.c.b16 %v457, %v455
    %v642 = vpack.c.b16 %v458, %v456
    %v643 = vpack.c.b16 %v461, %v459
    %v644 = vpack.c.b16 %v462, %v460
    %v645 = vpack.c.b16 %v465, %v463
    %v646 = vpack.c.b16 %v466, %v464
    %v647 = vpack.c.b16 %v469, %v467
    %v648 = vpack.c.b16 %v470, %v468
    %v649 = vpack.c.b16 %v473, %v471
    %v650 = vpack.c.b16 %v474, %v472
    %v651 = vpack.c.b16 %v477, %v475
    %v652 = vpack.c.b16 %v478, %v476
    %v653 = vpack.c.b16 %v481, %v479
    %v654 = vpack.c.b16 %v482, %v480
    %v655 = vpack.c.b16 %v485, %v483
    %v656 = vpack.c.b16 %v486, %v484
    %v657 = vpack.c.b16 %v489, %v487
    %v658 = vpack.c.b16 %v490, %v488
    %v659 = vpack.c.b16 %v493, %v491
    %v660 = vpack.c.b16 %v494, %v492
    %v661 = vpack.c.b16 %v497, %v495
    %v662 = vpack.c.b16 %v498, %v496
    %v663 = vpack.c.b16 %v501, %v499
    %v664 = vpack.c.b16 %v502, %v500
    %v665 = vpack.c.b16 %v505, %v503
    %v666 = vpack.c.b16 %v506, %v504
    %v667 = vpack.c.b16 %v509, %v507
    %v668 = vpack.c.b16 %v510, %v508
    %v669 = vpack.c.b16 %v513, %v511
    %v670 = vpack.c.b16 %v514, %v512
    %v671 = vpack.c.b16 %v517, %v515
    %v672 = vpack.c.b16 %v518, %v516
    %v673 = vpack.c.b16 %v521, %v519
    %v674 = vpack.c.b16 %v522, %v520
    %v675 = vpack.c.b16 %v525, %v523
    %v676 = vpack.c.b16 %v526, %v524
    %v677 = vpack.c.b16 %v529, %v527
    %v678 = vpack.c.b16 %v530, %v528
    %v679 = vpack.c.b16 %v533, %v531
    %v680 = vpack.c.b16 %v534, %v532
    %v681 = vpack.c.b16 %v537, %v535
    %v682 = vpack.c.b16 %v538, %v536
    %v683 = vpack.c.b16 %v541, %v539
    %v684 = vpack.c.b16 %v542, %v540
    %v685 = vpack.c.b16 %v545, %v543
    %v686 = vpack.c.b16 %v546, %v544
    %v687 = vpack.c.b16 %v549, %v547
    %v688 = vpack.c.b16 %v550, %v548
    %v689 = vpack.c.b16 %v553, %v551
    %v690 = vpack.c.b16 %v554, %v552
    %v691 = vpack.c.b16 %v557, %v555
    %v692 = vpack.c.b16 %v558, %v556
    %v693 = vpack.c.b16 %v561, %v559
    %v694 = vpack.c.b16 %v562, %v560
    %v695 = vpack.c.b16 %v565, %v563
    %v696 = vpack.c.b16 %v566, %v564
    %v697 = vpack.c.b16 %v569, %v567
    %v698 = vpack.c.b16 %v570, %v568
    %v699 = vpack.c.b16 %v573, %v571
    %v700 = vpack.c.b16 %v574, %v572
    %v701 = vpack.c.b16 %v577, %v575
    %v702 = vpack.c.b16 %v578, %v576
    %v703 = vpack.c.b16 %v581, %v579
    %v704 = vpack.c.b16 %v582, %v580
    %v705 = vpack.c.b16 %v585, %v583
    %v706 = vpack.c.b16 %v586, %v584
    %v707 = vpack.c.b16 %v589, %v587
    %v708 = vpack.c.b16 %v590, %v588
    %v709 = vpack.c.b16 %v593, %v591
    %v710 = vpack.c.b16 %v594, %v592
    %v711 = vpack.c.b16 %v597, %v595
    %v712 = vpack.c.b16 %v598, %v596
    %v713 = vpack.c.b16 %v601, %v599
    %v714 = vpack.c.b16 %v602, %v600
    %v715 = vpack.c.b16 %v605, %v603
    %v716 = vpack.c.b16 %v606, %v604
    %v717 = vpack.c.b16 %v609, %v607
    %v718 = vpack.c.b16 %v610, %v608
    %v719 = vpack.c.b16 %v613, %v611
    %v720 = vpack.c.b16 %v614, %v612
    %v721 = vpack.c.b16 %v617, %v615
    %v722 = vpack.c.b16 %v618, %v616
    %v723 = vpack.c.b16 %v621, %v619
    %v724 = vpack.c.b16 %v622, %v620
    %v725 = vpack.c.b16 %v625, %v623
    %v726 = vpack.c.b16 %v626, %v624
    %v727 = vpack.c.b16 %v629, %v627
    %v728 = vpack.c.b16 %v630, %v628
    %v729 = vpack.c.b16 %v633, %v631
    %v730 = vpack.c.b16 %v634, %v632
    %827 = vmatprep.subr.bf16.mxu0 %v636
    %828 = vmatpush1.bf16.msra.mxu0 %v635
    %829 = vmatprep.subr.bf16.mxu0 %v638
    %830 = vmatpush1.bf16.msra.mxu0 %v637
    %831 = vmatprep.subr.bf16.mxu0 %v640
    %832 = vmatpush1.bf16.msra.mxu0 %v639
    %833 = vmatprep.subr.bf16.mxu0 %v642
    %834 = vmatpush1.bf16.msra.mxu0 %v641
    %835 = vmatprep.subr.bf16.mxu0 %v644
    %836 = vmatpush1.bf16.msra.mxu0 %v643
    %837 = vmatprep.subr.bf16.mxu0 %v646
    %838 = vmatpush1.bf16.msra.mxu0 %v645
    %839 = vmatprep.subr.bf16.mxu0 %v648
    %840 = vmatpush1.bf16.msra.mxu0 %v647
    %841 = vmatprep.subr.bf16.mxu0 %v650
    %842 = vmatpush1.bf16.msra.mxu0 %v649
    %843 = vmatprep.subr.bf16.mxu0 %v652
    %844 = vmatpush1.bf16.msra.mxu0 %v651
    %845 = vmatprep.subr.bf16.mxu0 %v654
    %846 = vmatpush1.bf16.msra.mxu0 %v653
    %847 = vmatprep.subr.bf16.mxu0 %v656
    %848 = vmatpush1.bf16.msra.mxu0 %v655
    %849 = vmatprep.subr.bf16.mxu0 %v658
    %850 = vmatpush1.bf16.msra.mxu0 %v657
    %851 = vmatprep.subr.bf16.mxu0 %v660
    %852 = vmatpush1.bf16.msra.mxu0 %v659
    %853 = vmatprep.subr.bf16.mxu0 %v662
    %854 = vmatpush1.bf16.msra.mxu0 %v661
    %855 = vmatprep.subr.bf16.mxu0 %v664
    %856 = vmatpush1.bf16.msra.mxu0 %v663
    %857 = vmatprep.subr.bf16.mxu0 %v666
    %858 = vmatpush1.bf16.msra.mxu0 %v665
    %859 = vmatprep.mubr.bf16.mxu0 %v338
    %860 = vmatmul.mubr.bf16.gmra.mrb[0].mxu0 %v335
    %v861 = vpop.f32.mrb[0].mxu0
    %v862 = vadd.f32 %v192, %v861
    %v863 = vpop.f32.mrb[0].mxu0
    %v864 = vadd.f32 %v196, %v863
    %v865 = vpop.f32.mrb[0].mxu0
    %v866 = vadd.f32 %v192, %v865
    %v867 = vpop.f32.mrb[0].mxu0
    %v868 = vadd.f32 %v196, %v867
    %869 = vdwg.mxu0
    %870 = vmatprep.subr.bf16.mxu0 %v668
    %871 = vmatpush1.bf16.msra.mxu0 %v667
    %872 = vmatprep.subr.bf16.mxu0 %v670
    %873 = vmatpush1.bf16.msra.mxu0 %v669
    %874 = vmatprep.subr.bf16.mxu0 %v672
    %875 = vmatpush1.bf16.msra.mxu0 %v671
    %876 = vmatprep.subr.bf16.mxu0 %v674
    %877 = vmatpush1.bf16.msra.mxu0 %v673
    %878 = vmatprep.subr.bf16.mxu0 %v676
    %879 = vmatpush1.bf16.msra.mxu0 %v675
    %880 = vmatprep.subr.bf16.mxu0 %v678
    %881 = vmatpush1.bf16.msra.mxu0 %v677
    %882 = vmatprep.subr.bf16.mxu0 %v680
    %883 = vmatpush1.bf16.msra.mxu0 %v679
    %884 = vmatprep.subr.bf16.mxu0 %v682
    %885 = vmatpush1.bf16.msra.mxu0 %v681
    %886 = vmatprep.subr.bf16.mxu0 %v684
    %887 = vmatpush1.bf16.msra.mxu0 %v683
    %888 = vmatprep.subr.bf16.mxu0 %v686
    %889 = vmatpush1.bf16.msra.mxu0 %v685
    %890 = vmatprep.subr.bf16.mxu0 %v688
    %891 = vmatpush1.bf16.msra.mxu0 %v687
    %892 = vmatprep.subr.bf16.mxu0 %v690
    %893 = vmatpush1.bf16.msra.mxu0 %v689
    %894 = vmatprep.subr.bf16.mxu0 %v692
    %895 = vmatpush1.bf16.msra.mxu0 %v691
    %896 = vmatprep.subr.bf16.mxu0 %v694
    %897 = vmatpush1.bf16.msra.mxu0 %v693
    %898 = vmatprep.subr.bf16.mxu0 %v696
    %899 = vmatpush1.bf16.msra.mxu0 %v695
    %900 = vmatprep.subr.bf16.mxu0 %v698
    %901 = vmatpush1.bf16.msra.mxu0 %v697
    %902 = vmatprep.mubr.bf16.mxu0 %v339
    %903 = vmatmul.mubr.bf16.gmra.mrb[0].mxu0 %v336
    %v904 = vpop.f32.mrb[0].mxu0
    %v905 = vadd.f32 %v862, %v904
    %v906 = vpop.f32.mrb[0].mxu0
    %v907 = vadd.f32 %v864, %v906
    %v908 = vpop.f32.mrb[0].mxu0
    %v909 = vadd.f32 %v866, %v908
    %v910 = vpop.f32.mrb[0].mxu0
    %v911 = vadd.f32 %v868, %v910
    %912 = vdwg.mxu0
    %913 = vmatprep.subr.bf16.mxu0 %v700
    %914 = vmatpush1.bf16.msra.mxu0 %v699
    %915 = vmatprep.subr.bf16.mxu0 %v702
    %916 = vmatpush1.bf16.msra.mxu0 %v701
    %917 = vmatprep.subr.bf16.mxu0 %v704
    %918 = vmatpush1.bf16.msra.mxu0 %v703
    %919 = vmatprep.subr.bf16.mxu0 %v706
    %920 = vmatpush1.bf16.msra.mxu0 %v705
    %921 = vmatprep.subr.bf16.mxu0 %v708
    %922 = vmatpush1.bf16.msra.mxu0 %v707
    %923 = vmatprep.subr.bf16.mxu0 %v710
    %924 = vmatpush1.bf16.msra.mxu0 %v709
    %925 = vmatprep.subr.bf16.mxu0 %v712
    %926 = vmatpush1.bf16.msra.mxu0 %v711
    %927 = vmatprep.subr.bf16.mxu0 %v714
    %928 = vmatpush1.bf16.msra.mxu0 %v713
    %929 = vmatprep.subr.bf16.mxu0 %v716
    %930 = vmatpush1.bf16.msra.mxu0 %v715
    %931 = vmatprep.subr.bf16.mxu0 %v718
    %932 = vmatpush1.bf16.msra.mxu0 %v717
    %933 = vmatprep.subr.bf16.mxu0 %v720
    %934 = vmatpush1.bf16.msra.mxu0 %v719
    %935 = vmatprep.subr.bf16.mxu0 %v722
    %936 = vmatpush1.bf16.msra.mxu0 %v721
    %937 = vmatprep.subr.bf16.mxu0 %v724
    %938 = vmatpush1.bf16.msra.mxu0 %v723
    %939 = vmatprep.subr.bf16.mxu0 %v726
    %940 = vmatpush1.bf16.msra.mxu0 %v725
    %941 = vmatprep.subr.bf16.mxu0 %v728
    %942 = vmatpush1.bf16.msra.mxu0 %v727
    %943 = vmatprep.subr.bf16.mxu0 %v730
    %944 = vmatpush1.bf16.msra.mxu0 %v729
    %945 = vmatprep.mubr.bf16.mxu0 %v340
    %946 = vmatmul.mubr.bf16.gmra.mrb[0].mxu0 %v337
    %v947 = vpop.f32.mrb[0].mxu0
    %v948 = vadd.f32 %v905, %v947
    %v949 = vpop.f32.mrb[0].mxu0
    %v950 = vadd.f32 %v907, %v949
    %v951 = vpop.f32.mrb[0].mxu0
    %v952 = vadd.f32 %v909, %v951
    %v953 = vpop.f32.mrb[0].mxu0
    %v954 = vadd.f32 %v911, %v953
    %955 = vdwg.mxu0
    %v956 = vmax.f32 %v948, 0.0
    %v957 = vmax.f32 %v950, 0.0
    %v958 = vmax.f32 %v952, 0.0
    %v959 = vmax.f32 %v954, 0.0
    %v960 = vpack.c.bf16 %v958, %v956
    %v961 = vpack.c.bf16 %v959, %v957
    %v962 = vld [vmem:[#allocation7] sm:$0xf]
    %v963 = vld [vmem:[#allocation7 + $0x4] sm:$0xf]
    %v964 = vld [vmem:[#allocation7 + $0x8] sm:$0xf]
    %v965 = vld [vmem:[#allocation7 + $0xc] sm:$0xf]
    %v966 = vld [vmem:[#allocation7 + $0x10] sm:$0xf]
    %v967 = vld [vmem:[#allocation7 + $0x14] sm:$0xf]
    %v968 = vld [vmem:[#allocation7 + $0x18] sm:$0xf]
    %v969 = vld [vmem:[#allocation7 + $0x1c] sm:$0xf]
    %v970 = vld [vmem:[#allocation7 + $0x20] sm:$0xf]
    %v971 = vld [vmem:[#allocation7 + $0x24] sm:$0xf]
    %v972 = vld [vmem:[#allocation7 + $0x28] sm:$0xf]
    %v973 = vld [vmem:[#allocation7 + $0x2c] sm:$0xf]
    %v974 = vld [vmem:[#allocation7 + $0x30] sm:$0xf]
    %v975 = vld [vmem:[#allocation7 + $0x34] sm:$0xf]
    %v976 = vld [vmem:[#allocation7 + $0x38] sm:$0xf]
    %v977 = vld [vmem:[#allocation7 + $0x3c] sm:$0xf]
    %v978 = vld [vmem:[#allocation7 + $0x40] sm:$0xf]
    %v979 = vld [vmem:[#allocation7 + $0x44] sm:$0xf]
    %v980 = vld [vmem:[#allocation7 + $0x48] sm:$0xf]
    %v981 = vld [vmem:[#allocation7 + $0x4c] sm:$0xf]
    %v982 = vld [vmem:[#allocation7 + $0x50] sm:$0xf]
    %v983 = vld [vmem:[#allocation7 + $0x54] sm:$0xf]
    %v984 = vld [vmem:[#allocation7 + $0x58] sm:$0xf]
    %v985 = vld [vmem:[#allocation7 + $0x5c] sm:$0xf]
    %v986 = vld [vmem:[#allocation7 + $0x60] sm:$0xf]
    %v987 = vld [vmem:[#allocation7 + $0x64] sm:$0xf]
    %v988 = vld [vmem:[#allocation7 + $0x68] sm:$0xf]
    %v989 = vld [vmem:[#allocation7 + $0x6c] sm:$0xf]
    %v990 = vld [vmem:[#allocation7 + $0x70] sm:$0xf]
    %v991 = vld [vmem:[#allocation7 + $0x74] sm:$0xf]
    %v992 = vld [vmem:[#allocation7 + $0x78] sm:$0xf]
    %v993 = vld [vmem:[#allocation7 + $0x7c] sm:$0xf]
    %v994 = vld [vmem:[%s4] sm:$0x1]
    %v996 = vlaneseq
    %v997 = vshrl.u32 %v996, 7
    %v998 = vsub.s32 0, %v997
    %v999 = vrot.slane %v994, %v998
    %v1033 = vunpack.c.l.b16 %v962
    %v1034 = vunpack.c.l.b16 %v963
    %v1035 = vunpack.c.l.b16 %v964
    %v1036 = vunpack.c.l.b16 %v965
    %v1037 = vunpack.c.l.b16 %v966
    %v1038 = vunpack.c.l.b16 %v967
    %v1039 = vunpack.c.l.b16 %v968
    %v1040 = vunpack.c.l.b16 %v969
    %v1041 = vunpack.c.l.b16 %v970
    %v1042 = vunpack.c.l.b16 %v971
    %v1043 = vunpack.c.l.b16 %v972
    %v1044 = vunpack.c.l.b16 %v973
    %v1045 = vunpack.c.l.b16 %v974
    %v1046 = vunpack.c.l.b16 %v975
    %v1047 = vunpack.c.l.b16 %v976
    %v1048 = vunpack.c.l.b16 %v977
    %v1049 = vunpack.c.l.b16 %v978
    %v1050 = vunpack.c.l.b16 %v979
    %v1051 = vunpack.c.l.b16 %v980
    %v1052 = vunpack.c.l.b16 %v981
    %v1053 = vunpack.c.l.b16 %v982
    %v1054 = vunpack.c.l.b16 %v983
    %v1055 = vunpack.c.l.b16 %v984
    %v1056 = vunpack.c.l.b16 %v985
    %v1057 = vunpack.c.l.b16 %v986
    %v1058 = vunpack.c.l.b16 %v987
    %v1059 = vunpack.c.l.b16 %v988
    %v1060 = vunpack.c.l.b16 %v989
    %v1061 = vunpack.c.l.b16 %v990
    %v1062 = vunpack.c.l.b16 %v991
    %v1063 = vunpack.c.l.b16 %v992
    %v1064 = vunpack.c.l.b16 %v993
    %v1065 = vpack.c.b16 %v1034, %v1033
    %v1066 = vpack.c.b16 %v1036, %v1035
    %v1067 = vpack.c.b16 %v1038, %v1037
    %v1068 = vpack.c.b16 %v1040, %v1039
    %v1069 = vpack.c.b16 %v1042, %v1041
    %v1070 = vpack.c.b16 %v1044, %v1043
    %v1071 = vpack.c.b16 %v1046, %v1045
    %v1072 = vpack.c.b16 %v1048, %v1047
    %v1073 = vpack.c.b16 %v1050, %v1049
    %v1074 = vpack.c.b16 %v1052, %v1051
    %v1075 = vpack.c.b16 %v1054, %v1053
    %v1076 = vpack.c.b16 %v1056, %v1055
    %v1077 = vpack.c.b16 %v1058, %v1057
    %v1078 = vpack.c.b16 %v1060, %v1059
    %v1079 = vpack.c.b16 %v1062, %v1061
    %v1080 = vpack.c.b16 %v1064, %v1063
    %1097 = vmatprep.subr.bf16.mxu0 0
    %1098 = vmatpush1.bf16.msra.mxu0 %v1065
    %1099 = vmatprep.subr.bf16.mxu0 0
    %1100 = vmatpush1.bf16.msra.mxu0 %v1066
    %1101 = vmatprep.subr.bf16.mxu0 0
    %1102 = vmatpush1.bf16.msra.mxu0 %v1067
    %1103 = vmatprep.subr.bf16.mxu0 0
    %1104 = vmatpush1.bf16.msra.mxu0 %v1068
    %1105 = vmatprep.subr.bf16.mxu0 0
    %1106 = vmatpush1.bf16.msra.mxu0 %v1069
    %1107 = vmatprep.subr.bf16.mxu0 0
    %1108 = vmatpush1.bf16.msra.mxu0 %v1070
    %1109 = vmatprep.subr.bf16.mxu0 0
    %1110 = vmatpush1.bf16.msra.mxu0 %v1071
    %1111 = vmatprep.subr.bf16.mxu0 0
    %1112 = vmatpush1.bf16.msra.mxu0 %v1072
    %1113 = vmatprep.subr.bf16.mxu0 0
    %1114 = vmatpush1.bf16.msra.mxu0 %v1073
    %1115 = vmatprep.subr.bf16.mxu0 0
    %1116 = vmatpush1.bf16.msra.mxu0 %v1074
    %1117 = vmatprep.subr.bf16.mxu0 0
    %1118 = vmatpush1.bf16.msra.mxu0 %v1075
    %1119 = vmatprep.subr.bf16.mxu0 0
    %1120 = vmatpush1.bf16.msra.mxu0 %v1076
    %1121 = vmatprep.subr.bf16.mxu0 0
    %1122 = vmatpush1.bf16.msra.mxu0 %v1077
    %1123 = vmatprep.subr.bf16.mxu0 0
    %1124 = vmatpush1.bf16.msra.mxu0 %v1078
    %1125 = vmatprep.subr.bf16.mxu0 0
    %1126 = vmatpush1.bf16.msra.mxu0 %v1079
    %1127 = vmatprep.subr.bf16.mxu0 0
    %1128 = vmatpush1.bf16.msra.mxu0 %v1080
    %1129 = vmatprep.mubr.bf16.mxu0 %v961
    %1130 = vmatmul.mubr.bf16.gmra.mrb[0].mxu0 %v960
    %v1131 = vpop.f32.mrb[0].mxu0
    %v1132 = vadd.f32 %v999, %v1131
    %v1133 = vpop.f32.mrb[0].mxu0
    %v1134 = vpop.f32.mrb[0].mxu0
    %v1135 = vadd.f32 %v999, %v1134
    %v1136 = vpop.f32.mrb[0].mxu0
    %1137 = vdwg.mxu0
    %v1138 = vmax.f32 %v1132, 0.0
    %v1139 = vmax.f32 %v1135, 0.0
    %v1140 = vld [vmem:[#allocation8] sm:$0xff]
    %v1141 = vld [vmem:[#allocation8 + $0x8] sm:$0xff]
    %v1142 = vld [vmem:[#allocation8 + $0x10] sm:$0xff]
    %v1143 = vld [vmem:[#allocation8 + $0x18] sm:$0xff]
    %v1144 = vld [vmem:[#allocation8 + $0x20] sm:$0xff]
    %v1145 = vld [vmem:[#allocation8 + $0x28] sm:$0xff]
    %v1146 = vld [vmem:[#allocation8 + $0x30] sm:$0xff]
    %v1147 = vld [vmem:[#allocation8 + $0x38] sm:$0xff]
    %v1148 = vld [vmem:[#allocation8 + $0x40] sm:$0xff]
    %v1149 = vld [vmem:[#allocation8 + $0x48] sm:$0xff]
    %v1150 = vld [vmem:[#allocation8 + $0x50] sm:$0xff]
    %v1151 = vld [vmem:[#allocation8 + $0x58] sm:$0xff]
    %v1152 = vld [vmem:[#allocation8 + $0x60] sm:$0xff]
    %v1153 = vld [vmem:[#allocation8 + $0x68] sm:$0xff]
    %v1154 = vld [vmem:[#allocation8 + $0x70] sm:$0xff]
    %v1155 = vld [vmem:[#allocation8 + $0x78] sm:$0xff]
    %v1156 = vld [vmem:[%s6] sm:$0x1]
    %v1158 = vlaneseq
    %v1159 = vshrl.u32 %v1158, 7
    %v1160 = vsub.s32 0, %v1159
    %v1161 = vrot.slane %v1156, %v1160
    %1163 = vmatprep.subr.mxu0 0.0
    %1164 = vmatpush1.msra.mxu0 %v1140
    %1165 = vmatprep.subr.mxu0 0.0
    %1166 = vmatpush1.msra.mxu0 %v1141
    %1167 = vmatprep.subr.mxu0 0.0
    %1168 = vmatpush1.msra.mxu0 %v1142
    %1169 = vmatprep.subr.mxu0 0.0
    %1170 = vmatpush1.msra.mxu0 %v1143
    %1171 = vmatprep.subr.mxu0 0.0
    %1172 = vmatpush1.msra.mxu0 %v1144
    %1173 = vmatprep.subr.mxu0 0.0
    %1174 = vmatpush1.msra.mxu0 %v1145
    %1175 = vmatprep.subr.mxu0 0.0
    %1176 = vmatpush1.msra.mxu0 %v1146
    %1177 = vmatprep.subr.mxu0 0.0
    %1178 = vmatpush1.msra.mxu0 %v1147
    %1179 = vmatprep.subr.mxu0 0.0
    %1180 = vmatpush1.msra.mxu0 %v1148
    %1181 = vmatprep.subr.mxu0 0.0
    %1182 = vmatpush1.msra.mxu0 %v1149
    %1183 = vmatprep.subr.mxu0 0.0
    %1184 = vmatpush1.msra.mxu0 %v1150
    %1185 = vmatprep.subr.mxu0 0.0
    %1186 = vmatpush1.msra.mxu0 %v1151
    %1187 = vmatprep.subr.mxu0 0.0
    %1188 = vmatpush1.msra.mxu0 %v1152
    %1189 = vmatprep.subr.mxu0 0.0
    %1190 = vmatpush1.msra.mxu0 %v1153
    %1191 = vmatprep.subr.mxu0 0.0
    %1192 = vmatpush1.msra.mxu0 %v1154
    %1193 = vmatprep.subr.mxu0 0.0
    %1194 = vmatpush1.msra.mxu0 %v1155
    %1195 = vmatprep.subr.mxu0 0.0
    %1196 = vmatpush1.msra.mxu0 0.0
    %1197 = vmatprep.subr.mxu0 0.0
    %1198 = vmatpush1.msra.mxu0 0.0
    %1199 = vmatprep.subr.mxu0 0.0
    %1200 = vmatpush1.msra.mxu0 0.0
    %1201 = vmatprep.subr.mxu0 0.0
    %1202 = vmatpush1.msra.mxu0 0.0
    %1203 = vmatprep.subr.mxu0 0.0
    %1204 = vmatpush1.msra.mxu0 0.0
    %1205 = vmatprep.subr.mxu0 0.0
    %1206 = vmatpush1.msra.mxu0 0.0
    %1207 = vmatprep.subr.mxu0 0.0
    %1208 = vmatpush1.msra.mxu0 0.0
    %1209 = vmatprep.subr.mxu0 0.0
    %1210 = vmatpush1.msra.mxu0 0.0
    %1211 = vmatprep.subr.mxu0 0.0
    %1212 = vmatpush1.msra.mxu0 0.0
    %1213 = vmatprep.subr.mxu0 0.0
    %1214 = vmatpush1.msra.mxu0 0.0
    %1215 = vmatprep.subr.mxu0 0.0
    %1216 = vmatpush1.msra.mxu0 0.0
    %1217 = vmatprep.subr.mxu0 0.0
    %1218 = vmatpush1.msra.mxu0 0.0
    %1219 = vmatprep.subr.mxu0 0.0
    %1220 = vmatpush1.msra.mxu0 0.0
    %1221 = vmatprep.subr.mxu0 0.0
    %1222 = vmatpush1.msra.mxu0 0.0
    %1223 = vmatprep.subr.mxu0 0.0
    %1224 = vmatpush1.msra.mxu0 0.0
    %1225 = vmatprep.subr.mxu0 0.0
    %1226 = vmatpush1.msra.mxu0 0.0
    %1227 = vmatprep.mubr.f32.mxu0 0.0
    %1228 = vmatmul.mubr.f32.gmra.mrb[0].mxu0 %v1138
    %v1229 = vpop.f32.mrb[0].mxu0
    %v1230 = vadd.f32 %v1161, %v1229
    %v1231 = vpop.f32.mrb[0].mxu0
    %1232 = vmatprep.mubr.f32.mxu0 0.0
    %1233 = vmatmul.mubr.f32.gmra.mrb[0].mxu0 %v1139
    %v1234 = vpop.f32.mrb[0].mxu0
    %v1235 = vadd.f32 %v1161, %v1234
    %v1236 = vpop.f32.mrb[0].mxu0
    %1237 = vdwg.mxu0
    %1238 = vst [vmem:[#allocation10] sm:$0xff] %v1230
    %1239 = vst [vmem:[#allocation10 + $0x8] sm:$0xff] %v1235
    // Predicated region
    $region46: #{tpu_custom_call.1} parent=1 // pred_check
      _
    $region47: #{tpu_custom_call.1} parent=1 // pred_check_branch
      %1241 = sbr.rel (0) target = $region49
    $region48: #{tpu_custom_call.1} parent=1 // pred_region
      %s1243 = ssub.s32 256, 32
      %1244 = vsyncadd [#allocation4], %s1243
      %s1245 = sshll.u32 [#allocation10], 4
      %s1246 = int_to_ptr.vmem [resolvable:$true] %s1245
      %1251 = dma.vmem_to_hbm [thread:$0]  %s1246, 32, %s7, [#allocation4], 32, 32, 2
    $region49: #{tpu_custom_call.1} parent=1 // pred_fallthru
      _
    // Predicated region
    $region50: #{tpu_custom_call.1} parent=1 // pred_check
      _
    $region51: #{tpu_custom_call.1} parent=1 // pred_check_branch
      %1253 = sbr.rel (0) target = $region53
    $region52: #{tpu_custom_call.1} parent=1 // pred_region
      %1254 = dma.done [#allocation4], 256
    $region53: #{tpu_custom_call.1} parent=1 // pred_fallthru
      _
    %1255 = vsyncpa [#allocation3], 1
    %1256 = vsyncpa [#allocation6], 1
    %1257 = vsyncpa [#allocation9], 1
    %1258 = vsyncpa [#allocation4], 1

// kernel: tpu_custom_call.1
$region0: #{tpu_custom_call.1}
  #allocation0 [shape = 'u32[]', space=smem, size = 0x4, offset = 0x4, fixed_abs, tag = 'smem constant byte address 0x4 - core index']
  #allocation1 [shape = 'u32[144,128]{1,0:T(1,128)}', space=vmem, size = 0x12000, scoped, tag = 'internal scratch']
  %s0 = inlined_call_operand.hbm [shape: bf16[2,768], index: 0, kind: input, shape index: {}]
  %s1 = inlined_call_operand.hbm [shape: bf16[768,256], index: 1, kind: input, shape index: {}]
  %s2 = inlined_call_operand.vmem [shape: f32[1,256], index: 2, kind: input, shape index: {}]
  %s3 = inlined_call_operand.hbm [shape: bf16[256,128], index: 3, kind: input, shape index: {}]
  %s4 = inlined_call_operand.vmem [shape: f32[1,128], index: 4, kind: input, shape index: {}]
  %s5 = inlined_call_operand.hbm [shape: f32[128,128], index: 5, kind: input, shape index: {}]
  %s6 = inlined_call_operand.vmem [shape: f32[1,128], index: 6, kind: input, shape index: {}]
  %s7 = inlined_call_operand.hbm [shape: f32[2,128], index: 7, kind: output, shape index: {}]
  %s8 = sld [smem:[#allocation0]]
  $region54: #{tpu_custom_call.1} parent=0
    _
  %s10 = ssub.s32 1, %s8
  %s11 = scalar_select 0, %s10, %s8
  $region1: #{tpu_custom_call.1} parent=0
    #allocation2 [shape = 'u8[24576]{0}', space=vmem, size = 0x6000, scoped, tag = 'input window, operand 0, single buffered']
    #allocation3 [shape = 's32[1]{0}', space=sflag, size = 0x4, scoped, tag = 'scoped memory for tpu_custom_call.1']
    #allocation4 [shape = 's32[1]{0}', space=sflag, size = 0x4, scoped, tag = 'scoped memory for tpu_custom_call.1']
    #allocation5 [shape = 'u8[393216]{0}', space=vmem, size = 0x60000, scoped, tag = 'input window, operand 1, single buffered']
    #allocation6 [shape = 's32[1]{0}', space=sflag, size = 0x4, scoped, tag = 'scoped memory for tpu_custom_call.1']
    #allocation7 [shape = 'u8[65536]{0}', space=vmem, size = 0x10000, scoped, tag = 'input window, operand 3, single buffered']
    #allocation8 [shape = 'u8[65536]{0}', space=vmem, size = 0x10000, scoped, tag = 'input window, operand 5, single buffered']
    #allocation9 [shape = 's32[1]{0}', space=sflag, size = 0x4, scoped, tag = 'scoped memory for tpu_custom_call.1']
    #allocation10 [shape = 'u8[8192]{0}', space=vmem, size = 0x2000, scoped, tag = 'output window, operand 0, single buffered']
    %12 = vsyncpa [#allocation3], 0
    %13 = vsyncpa [#allocation6], 0
    %14 = vsyncpa [#allocation9], 0
    %15 = vsyncpa [#allocation4], 0
    // Predicated region
    $region2: #{tpu_custom_call.1} parent=1 // pred_check
      _
    $region3: #{tpu_custom_call.1} parent=1 // pred_check_branch
      %17 = sbr.rel (0) target = $region5
    $region4: #{tpu_custom_call.1} parent=1 // pred_region
      %s19 = ssub.s32 768, 96
      %20 = vsyncadd [#allocation3], %s19
      %s21 = sshll.u32 [#allocation2], 4
      %s22 = int_to_ptr.vmem [resolvable:$true] %s21
      %27 = dma.hbm_to_vmem [thread:$0]  %s0, 96, %s22, [#allocation3], 96, 96, 6
    $region5: #{tpu_custom_call.1} parent=1 // pred_fallthru
      _
    // Predicated region
    $region6: #{tpu_custom_call.1} parent=1 // pred_check
      _
    $region7: #{tpu_custom_call.1} parent=1 // pred_check_branch
      %29 = sbr.rel (0) target = $region9
    $region8: #{tpu_custom_call.1} parent=1 // pred_region
      %s31 = ssub.s32 12288, 12288
      %32 = vsyncadd [#allocation6], %s31
      %s33 = sshll.u32 [#allocation5], 4
      %s34 = int_to_ptr.vmem [resolvable:$true] %s33
      %39 = dma.hbm_to_vmem [thread:$0]  %s1, 12288, %s34, [#allocation6], 128, 128, 8
    $region9: #{tpu_custom_call.1} parent=1 // pred_fallthru
      _
    // Predicated region
    $region10: #{tpu_custom_call.1} parent=1 // pred_check
      _
    $region11: #{tpu_custom_call.1} parent=1 // pred_check_branch
      %41 = sbr.rel (0) target = $region13
    $region12: #{tpu_custom_call.1} parent=1 // pred_region
      _
    $region13: #{tpu_custom_call.1} parent=1 // pred_fallthru
      _
    // Predicated region
    $region14: #{tpu_custom_call.1} parent=1 // pred_check
      _
    $region15: #{tpu_custom_call.1} parent=1 // pred_check_branch
      %43 = sbr.rel (0) target = $region17
    $region16: #{tpu_custom_call.1} parent=1 // pred_region
      %s45 = ssub.s32 2048, 2048
      %46 = vsyncadd [#allocation6], %s45
      %s47 = sshll.u32 [#allocation7], 4
      %s48 = int_to_ptr.vmem [resolvable:$true] %s47
      %53 = dma.hbm_to_vmem [thread:$0]  %s3, 2048, %s48, [#allocation6], 64, 64, 4
    $region17: #{tpu_custom_call.1} parent=1 // pred_fallthru
      _
    // Predicated region
    $region18: #{tpu_custom_call.1} parent=1 // pred_check
      _
    $region19: #{tpu_custom_call.1} parent=1 // pred_check_branch
      %55 = sbr.rel (0) target = $region21
    $region20: #{tpu_custom_call.1} parent=1 // pred_region
      _
    $region21: #{tpu_custom_call.1} parent=1 // pred_fallthru
      _
    // Predicated region
    $region22: #{tpu_custom_call.1} parent=1 // pred_check
      _
    $region23: #{tpu_custom_call.1} parent=1 // pred_check_branch
      %57 = sbr.rel (0) target = $region25
    $region24: #{tpu_custom_call.1} parent=1 // pred_region
      %s59 = ssub.s32 2048, 2048
      %60 = vsyncadd [#allocation9], %s59
      %s61 = sshll.u32 [#allocation8], 4
      %s62 = int_to_ptr.vmem [resolvable:$true] %s61
      %67 = dma.hbm_to_vmem [thread:$0]  %s5, 2048, %s62, [#allocation9], 128, 128, 8
    $region25: #{tpu_custom_call.1} parent=1 // pred_fallthru
      _
    // Predicated region
    $region26: #{tpu_custom_call.1} parent=1 // pred_check
      _
    $region27: #{tpu_custom_call.1} parent=1 // pred_check_branch
      %69 = sbr.rel (0) target = $region29
    $region28: #{tpu_custom_call.1} parent=1 // pred_region
      _
    $region29: #{tpu_custom_call.1} parent=1 // pred_fallthru
      _
    // Predicated region
    $region30: #{tpu_custom_call.1} parent=1 // pred_check
      _
    $region31: #{tpu_custom_call.1} parent=1 // pred_check_branch
      %71 = sbr.rel (0) target = $region33
    $region32: #{tpu_custom_call.1} parent=1 // pred_region
      %72 = dma.done [#allocation3], 768
    $region33: #{tpu_custom_call.1} parent=1 // pred_fallthru
      _
    // Predicated region
    $region34: #{tpu_custom_call.1} parent=1 // pred_check
      _
    $region35: #{tpu_custom_call.1} parent=1 // pred_check_branch
      %74 = sbr.rel (0) target = $region37
    $region36: #{tpu_custom_call.1} parent=1 // pred_region
      %75 = dma.done [#allocation6], 12288
    $region37: #{tpu_custom_call.1} parent=1 // pred_fallthru
      _
    // Predicated region
    $region38: #{tpu_custom_call.1} parent=1 // pred_check
      _
    $region39: #{tpu_custom_call.1} parent=1 // pred_check_branch
      %77 = sbr.rel (0) target = $region41
    $region40: #{tpu_custom_call.1} parent=1 // pred_region
      %78 = dma.done [#allocation6], 2048
    $region41: #{tpu_custom_call.1} parent=1 // pred_fallthru
      _
    // Predicated region
    $region42: #{tpu_custom_call.1} parent=1 // pred_check
      _
    $region43: #{tpu_custom_call.1} parent=1 // pred_check_branch
      %80 = sbr.rel (0) target = $region45
    $region44: #{tpu_custom_call.1} parent=1 // pred_region
      %81 = dma.done [#allocation9], 2048
    $region45: #{tpu_custom_call.1} parent=1 // pred_fallthru
      _
    %v83 = vld [vmem:[#allocation2] sm:$0x3f]
    %v84 = vld [vmem:[#allocation2 + $0x6] sm:$0x3f]
    %v85 = vld [vmem:[#allocation2 + $0xc] sm:$0x3f]
    %v86 = vld [vmem:[#allocation2 + $0x12] sm:$0x3f]
    %v87 = vld [vmem:[#allocation2 + $0x18] sm:$0x3f]
    %v88 = vld [vmem:[#allocation2 + $0x1e] sm:$0x3f]
    %v89 = vld [vmem:[#allocation2 + $0x24] sm:$0x3f]
    %v90 = vld [vmem:[#allocation2 + $0x2a] sm:$0x3f]
    %v91 = vld [vmem:[#allocation5] sm:$0xff]
    %v92 = vld [vmem:[#allocation5 + $0x8] sm:$0xff]
    %v93 = vld [vmem:[#allocation5 + $0x10] sm:$0xff]
    %v94 = vld [vmem:[#allocation5 + $0x18] sm:$0xff]
    %v95 = vld [vmem:[#allocation5 + $0x20] sm:$0xff]
    %v96 = vld [vmem:[#allocation5 + $0x28] sm:$0xff]
    %v97 = vld [vmem:[#allocation5 + $0x30] sm:$0xff]
    %v98 = vld [vmem:[#allocation5 + $0x38] sm:$0xff]
    %v99 = vld [vmem:[#allocation5 + $0x40] sm:$0xff]
    %v100 = vld [vmem:[#allocation5 + $0x48] sm:$0xff]
    %v101 = vld [vmem:[#allocation5 + $0x50] sm:$0xff]
    %v102 = vld [vmem:[#allocation5 + $0x58] sm:$0xff]
    %v103 = vld [vmem:[#allocation5 + $0x60] sm:$0xff]
    %v104 = vld [vmem:[#allocation5 + $0x68] sm:$0xff]
    %v105 = vld [vmem:[#allocation5 + $0x70] sm:$0xff]
    %v106 = vld [vmem:[#allocation5 + $0x78] sm:$0xff]
    %v107 = vld [vmem:[#allocation5 + $0x80] sm:$0xff]
    %v108 = vld [vmem:[#allocation5 + $0x88] sm:$0xff]
    %v109 = vld [vmem:[#allocation5 + $0x90] sm:$0xff]
    %v110 = vld [vmem:[#allocation5 + $0x98] sm:$0xff]
    %v111 = vld [vmem:[#allocation5 + $0xa0] sm:$0xff]
    %v112 = vld [vmem:[#allocation5 + $0xa8] sm:$0xff]
    %v113 = vld [vmem:[#allocation5 + $0xb0] sm:$0xff]
    %v114 = vld [vmem:[#allocation5 + $0xb8] sm:$0xff]
    %v115 = vld [vmem:[#allocation5 + $0xc0] sm:$0xff]
    %v116 = vld [vmem:[#allocation5 + $0xc8] sm:$0xff]
    %v117 = vld [vmem:[#allocation5 + $0xd0] sm:$0xff]
    %v118 = vld [vmem:[#allocation5 + $0xd8] sm:$0xff]
    %v119 = vld [vmem:[#allocation5 + $0xe0] sm:$0xff]
    %v120 = vld [vmem:[#allocation5 + $0xe8] sm:$0xff]
    %v121 = vld [vmem:[#allocation5 + $0xf0] sm:$0xff]
    %v122 = vld [vmem:[#allocation5 + $0xf8] sm:$0xff]
    %v123 = vld [vmem:[#allocation5 + $0x100] sm:$0xff]
    %v124 = vld [vmem:[#allocation5 + $0x108] sm:$0xff]
    %v125 = vld [vmem:[#allocation5 + $0x110] sm:$0xff]
    %v126 = vld [vmem:[#allocation5 + $0x118] sm:$0xff]
    %v127 = vld [vmem:[#allocation5 + $0x120] sm:$0xff]
    %v128 = vld [vmem:[#allocation5 + $0x128] sm:$0xff]
    %v129 = vld [vmem:[#allocation5 + $0x130] sm:$0xff]
    %v130 = vld [vmem:[#allocation5 + $0x138] sm:$0xff]
    %v131 = vld [vmem:[#allocation5 + $0x140] sm:$0xff]
    %v132 = vld [vmem:[#allocation5 + $0x148] sm:$0xff]
    %v133 = vld [vmem:[#allocation5 + $0x150] sm:$0xff]
    %v134 = vld [vmem:[#allocation5 + $0x158] sm:$0xff]
    %v135 = vld [vmem:[#allocation5 + $0x160] sm:$0xff]
    %v136 = vld [vmem:[#allocation5 + $0x168] sm:$0xff]
    %v137 = vld [vmem:[#allocation5 + $0x170] sm:$0xff]
    %v138 = vld [vmem:[#allocation5 + $0x178] sm:$0xff]
    %v139 = vld [vmem:[#allocation5 + $0x180] sm:$0xff]
    %v140 = vld [vmem:[#allocation5 + $0x188] sm:$0xff]
    %v141 = vld [vmem:[#allocation5 + $0x190] sm:$0xff]
    %v142 = vld [vmem:[#allocation5 + $0x198] sm:$0xff]
    %v143 = vld [vmem:[#allocation5 + $0x1a0] sm:$0xff]
    %v144 = vld [vmem:[#allocation5 + $0x1a8] sm:$0xff]
    %v145 = vld [vmem:[#allocation5 + $0x1b0] sm:$0xff]
    %v146 = vld [vmem:[#allocation5 + $0x1b8] sm:$0xff]
    %v147 = vld [vmem:[#allocation5 + $0x1c0] sm:$0xff]
    %v148 = vld [vmem:[#allocation5 + $0x1c8] sm:$0xff]
    %v149 = vld [vmem:[#allocation5 + $0x1d0] sm:$0xff]
    %v150 = vld [vmem:[#allocation5 + $0x1d8] sm:$0xff]
    %v151 = vld [vmem:[#allocation5 + $0x1e0] sm:$0xff]
    %v152 = vld [vmem:[#allocation5 + $0x1e8] sm:$0xff]
    %v153 = vld [vmem:[#allocation5 + $0x1f0] sm:$0xff]
    %v154 = vld [vmem:[#allocation5 + $0x1f8] sm:$0xff]
    %v155 = vld [vmem:[#allocation5 + $0x200] sm:$0xff]
    %v156 = vld [vmem:[#allocation5 + $0x208] sm:$0xff]
    %v157 = vld [vmem:[#allocation5 + $0x210] sm:$0xff]
    %v158 = vld [vmem:[#allocation5 + $0x218] sm:$0xff]
    %v159 = vld [vmem:[#allocation5 + $0x220] sm:$0xff]
    %v160 = vld [vmem:[#allocation5 + $0x228] sm:$0xff]
    %v161 = vld [vmem:[#allocation5 + $0x230] sm:$0xff]
    %v162 = vld [vmem:[#allocation5 + $0x238] sm:$0xff]
    %v163 = vld [vmem:[#allocation5 + $0x240] sm:$0xff]
    %v164 = vld [vmem:[#allocation5 + $0x248] sm:$0xff]
    %v165 = vld [vmem:[#allocation5 + $0x250] sm:$0xff]
    %v166 = vld [vmem:[#allocation5 + $0x258] sm:$0xff]
    %v167 = vld [vmem:[#allocation5 + $0x260] sm:$0xff]
    %v168 = vld [vmem:[#allocation5 + $0x268] sm:$0xff]
    %v169 = vld [vmem:[#allocation5 + $0x270] sm:$0xff]
    %v170 = vld [vmem:[#allocation5 + $0x278] sm:$0xff]
    %v171 = vld [vmem:[#allocation5 + $0x280] sm:$0xff]
    %v172 = vld [vmem:[#allocation5 + $0x288] sm:$0xff]
    %v173 = vld [vmem:[#allocation5 + $0x290] sm:$0xff]
    %v174 = vld [vmem:[#allocation5 + $0x298] sm:$0xff]
    %v175 = vld [vmem:[#allocation5 + $0x2a0] sm:$0xff]
    %v176 = vld [vmem:[#allocation5 + $0x2a8] sm:$0xff]
    %v177 = vld [vmem:[#allocation5 + $0x2b0] sm:$0xff]
    %v178 = vld [vmem:[#allocation5 + $0x2b8] sm:$0xff]
    %v179 = vld [vmem:[#allocation5 + $0x2c0] sm:$0xff]
    %v180 = vld [vmem:[#allocation5 + $0x2c8] sm:$0xff]
    %v181 = vld [vmem:[#allocation5 + $0x2d0] sm:$0xff]
    %v182 = vld [vmem:[#allocation5 + $0x2d8] sm:$0xff]
    %v183 = vld [vmem:[#allocation5 + $0x2e0] sm:$0xff]
    %v184 = vld [vmem:[#allocation5 + $0x2e8] sm:$0xff]
    %v185 = vld [vmem:[#allocation5 + $0x2f0] sm:$0xff]
    %v186 = vld [vmem:[#allocation5 + $0x2f8] sm:$0xff]
    %v187 = vld [vmem:[%s2] sm:$0x3]
    %v189 = vlaneseq
    %v190 = vshrl.u32 %v189, 7
    %v191 = vsub.s32 0, %v190
    %v192 = vrot.slane %v187, %v191
    %v193 = vlaneseq
    %v194 = vshrl.u32 %v193, 7
    %v195 = vsub.s32 1, %v194
    %v196 = vrot.slane %v187, %v195
    %v207 = vcombine.low %v83, %v84
    %v208 = vcombine.high %v83, %v84
    %v209 = vcombine.low %v85, %v86
    %v210 = vcombine.high %v85, %v86
    %v211 = vcombine.low %v87, %v88
    %v212 = vcombine.high %v87, %v88
    %v213 = vcombine.low %v89, %v90
    %v214 = vcombine.high %v89, %v90
    %v216 = vunpack.c.l.s4 1966171168
    %v217 = vunpack.c.0.s8 %v216
    %v218 = vlaneseq
    %v219 = vshrl.u32 %v218, 7
    %v220 = vsub.s32 %v217, %v219
    %v221 = vrot.slane %v207, %v220
    %v223 = vunpack.c.l.s4 1966171168
    %v224 = vunpack.c.0.s8 %v223
    %v225 = vlaneseq
    %v226 = vshrl.u32 %v225, 7
    %v227 = vsub.s32 %v224, %v226
    %v228 = vrot.slane %v208, %v227
    %v230 = vunpack.c.l.s4 1966171168
    %v231 = vunpack.c.0.s8 %v230
    %v232 = vlaneseq
    %v233 = vshrl.u32 %v232, 7
    %v234 = vsub.s32 %v231, %v233
    %v235 = vrot.slane %v209, %v234
    %v237 = vunpack.c.l.s4 1966171168
    %v238 = vunpack.c.0.s8 %v237
    %v239 = vlaneseq
    %v240 = vshrl.u32 %v239, 7
    %v241 = vsub.s32 %v238, %v240
    %v242 = vrot.slane %v210, %v241
    %v244 = vunpack.c.l.s4 1966171168
    %v245 = vunpack.c.0.s8 %v244
    %v246 = vlaneseq
    %v247 = vshrl.u32 %v246, 7
    %v248 = vsub.s32 %v245, %v247
    %v249 = vrot.slane %v211, %v248
    %v251 = vunpack.c.l.s4 1966171168
    %v252 = vunpack.c.0.s8 %v251
    %v253 = vlaneseq
    %v254 = vshrl.u32 %v253, 7
    %v255 = vsub.s32 %v252, %v254
    %v256 = vrot.slane %v212, %v255
    %v258 = vunpack.c.l.s4 1966171168
    %v259 = vunpack.c.0.s8 %v258
    %v260 = vlaneseq
    %v261 = vshrl.u32 %v260, 7
    %v262 = vsub.s32 %v259, %v261
    %v263 = vrot.slane %v213, %v262
    %v265 = vunpack.c.l.s4 1966171168
    %v266 = vunpack.c.0.s8 %v265
    %v267 = vlaneseq
    %v268 = vshrl.u32 %v267, 7
    %v269 = vsub.s32 %v266, %v268
    %v270 = vrot.slane %v214, %v269
    %v271 = vcombine.low %v221, %v235
    %v272 = vcombine.high %v221, %v235
    %v273 = vcombine.low %v228, %v242
    %v274 = vcombine.high %v228, %v242
    %v275 = vcombine.low %v249, %v263
    %v276 = vcombine.high %v249, %v263
    %v277 = vcombine.low %v256, %v270
    %v278 = vcombine.high %v256, %v270
    %v280 = vunpack.c.l.s4 1966171168
    %v281 = vunpack.c.0.s8 %v280
    %v282 = vlaneseq
    %v283 = vshrl.u32 %v282, 7
    %v284 = vsub.s32 %v281, %v283
    %v285 = vrot.slane %v271, %v284
    %v287 = vunpack.c.l.s4 1966171168
    %v288 = vunpack.c.0.s8 %v287
    %v289 = vlaneseq
    %v290 = vshrl.u32 %v289, 7
    %v291 = vsub.s32 %v288, %v290
    %v292 = vrot.slane %v273, %v291
    %v294 = vunpack.c.l.s4 1966171168
    %v295 = vunpack.c.0.s8 %v294
    %v296 = vlaneseq
    %v297 = vshrl.u32 %v296, 7
    %v298 = vsub.s32 %v295, %v297
    %v299 = vrot.slane %v272, %v298
    %v301 = vunpack.c.l.s4 1966171168
    %v302 = vunpack.c.0.s8 %v301
    %v303 = vlaneseq
    %v304 = vshrl.u32 %v303, 7
    %v305 = vsub.s32 %v302, %v304
    %v306 = vrot.slane %v274, %v305
    %v308 = vunpack.c.l.s4 1966171168
    %v309 = vunpack.c.0.s8 %v308
    %v310 = vlaneseq
    %v311 = vshrl.u32 %v310, 7
    %v312 = vsub.s32 %v309, %v311
    %v313 = vrot.slane %v275, %v312
    %v315 = vunpack.c.l.s4 1966171168
    %v316 = vunpack.c.0.s8 %v315
    %v317 = vlaneseq
    %v318 = vshrl.u32 %v317, 7
    %v319 = vsub.s32 %v316, %v318
    %v320 = vrot.slane %v277, %v319
    %v322 = vunpack.c.l.s4 1966171168
    %v323 = vunpack.c.0.s8 %v322
    %v324 = vlaneseq
    %v325 = vshrl.u32 %v324, 7
    %v326 = vsub.s32 %v323, %v325
    %v327 = vrot.slane %v276, %v326
    %v329 = vunpack.c.l.s4 1966171168
    %v330 = vunpack.c.0.s8 %v329
    %v331 = vlaneseq
    %v332 = vshrl.u32 %v331, 7
    %v333 = vsub.s32 %v330, %v332
    %v334 = vrot.slane %v278, %v333
    %v335 = vcombine.low %v285, %v313
    %v336 = vcombine.high %v285, %v313
    %v337 = vcombine.low %v292, %v320
    %v338 = vcombine.low %v299, %v327
    %v339 = vcombine.high %v299, %v327
    %v340 = vcombine.low %v306, %v334
    %v443 = vunpack.c.l.b16 %v91
    %v444 = vunpack.c.h.b16 %v91
    %v445 = vunpack.c.l.b16 %v92
    %v446 = vunpack.c.h.b16 %v92
    %v447 = vunpack.c.l.b16 %v93
    %v448 = vunpack.c.h.b16 %v93
    %v449 = vunpack.c.l.b16 %v94
    %v450 = vunpack.c.h.b16 %v94
    %v451 = vunpack.c.l.b16 %v95
    %v452 = vunpack.c.h.b16 %v95
    %v453 = vunpack.c.l.b16 %v96
    %v454 = vunpack.c.h.b16 %v96
    %v455 = vunpack.c.l.b16 %v97
    %v456 = vunpack.c.h.b16 %v97
    %v457 = vunpack.c.l.b16 %v98
    %v458 = vunpack.c.h.b16 %v98
    %v459 = vunpack.c.l.b16 %v99
    %v460 = vunpack.c.h.b16 %v99
    %v461 = vunpack.c.l.b16 %v100
    %v462 = vunpack.c.h.b16 %v100
    %v463 = vunpack.c.l.b16 %v101
    %v464 = vunpack.c.h.b16 %v101
    %v465 = vunpack.c.l.b16 %v102
    %v466 = vunpack.c.h.b16 %v102
    %v467 = vunpack.c.l.b16 %v103
    %v468 = vunpack.c.h.b16 %v103
    %v469 = vunpack.c.l.b16 %v104
    %v470 = vunpack.c.h.b16 %v104
    %v471 = vunpack.c.l.b16 %v105
    %v472 = vunpack.c.h.b16 %v105
    %v473 = vunpack.c.l.b16 %v106
    %v474 = vunpack.c.h.b16 %v106
    %v475 = vunpack.c.l.b16 %v107
    %v476 = vunpack.c.h.b16 %v107
    %v477 = vunpack.c.l.b16 %v108
    %v478 = vunpack.c.h.b16 %v108
    %v479 = vunpack.c.l.b16 %v109
    %v480 = vunpack.c.h.b16 %v109
    %v481 = vunpack.c.l.b16 %v110
    %v482 = vunpack.c.h.b16 %v110
    %v483 = vunpack.c.l.b16 %v111
    %v484 = vunpack.c.h.b16 %v111
    %v485 = vunpack.c.l.b16 %v112
    %v486 = vunpack.c.h.b16 %v112
    %v487 = vunpack.c.l.b16 %v113
    %v488 = vunpack.c.h.b16 %v113
    %v489 = vunpack.c.l.b16 %v114
    %v490 = vunpack.c.h.b16 %v114
    %v491 = vunpack.c.l.b16 %v115
    %v492 = vunpack.c.h.b16 %v115
    %v493 = vunpack.c.l.b16 %v116
    %v494 = vunpack.c.h.b16 %v116
    %v495 = vunpack.c.l.b16 %v117
    %v496 = vunpack.c.h.b16 %v117
    %v497 = vunpack.c.l.b16 %v118
    %v498 = vunpack.c.h.b16 %v118
    %v499 = vunpack.c.l.b16 %v119
    %v500 = vunpack.c.h.b16 %v119
    %v501 = vunpack.c.l.b16 %v120
    %v502 = vunpack.c.h.b16 %v120
    %v503 = vunpack.c.l.b16 %v121
    %v504 = vunpack.c.h.b16 %v121
    %v505 = vunpack.c.l.b16 %v122
    %v506 = vunpack.c.h.b16 %v122
    %v507 = vunpack.c.l.b16 %v123
    %v508 = vunpack.c.h.b16 %v123
    %v509 = vunpack.c.l.b16 %v124
    %v510 = vunpack.c.h.b16 %v124
    %v511 = vunpack.c.l.b16 %v125
    %v512 = vunpack.c.h.b16 %v125
    %v513 = vunpack.c.l.b16 %v126
    %v514 = vunpack.c.h.b16 %v126
    %v515 = vunpack.c.l.b16 %v127
    %v516 = vunpack.c.h.b16 %v127
    %v517 = vunpack.c.l.b16 %v128
    %v518 = vunpack.c.h.b16 %v128
    %v519 = vunpack.c.l.b16 %v129
    %v520 = vunpack.c.h.b16 %v129
    %v521 = vunpack.c.l.b16 %v130
    %v522 = vunpack.c.h.b16 %v130
    %v523 = vunpack.c.l.b16 %v131
    %v524 = vunpack.c.h.b16 %v131
    %v525 = vunpack.c.l.b16 %v132
    %v526 = vunpack.c.h.b16 %v132
    %v527 = vunpack.c.l.b16 %v133
    %v528 = vunpack.c.h.b16 %v133
    %v529 = vunpack.c.l.b16 %v134
    %v530 = vunpack.c.h.b16 %v134
    %v531 = vunpack.c.l.b16 %v135
    %v532 = vunpack.c.h.b16 %v135
    %v533 = vunpack.c.l.b16 %v136
    %v534 = vunpack.c.h.b16 %v136
    %v535 = vunpack.c.l.b16 %v137
    %v536 = vunpack.c.h.b16 %v137
    %v537 = vunpack.c.l.b16 %v138
    %v538 = vunpack.c.h.b16 %v138
    %v539 = vunpack.c.l.b16 %v139
    %v540 = vunpack.c.h.b16 %v139
    %v541 = vunpack.c.l.b16 %v140
    %v542 = vunpack.c.h.b16 %v140
    %v543 = vunpack.c.l.b16 %v141
    %v544 = vunpack.c.h.b16 %v141
    %v545 = vunpack.c.l.b16 %v142
    %v546 = vunpack.c.h.b16 %v142
    %v547 = vunpack.c.l.b16 %v143
    %v548 = vunpack.c.h.b16 %v143
    %v549 = vunpack.c.l.b16 %v144
    %v550 = vunpack.c.h.b16 %v144
    %v551 = vunpack.c.l.b16 %v145
    %v552 = vunpack.c.h.b16 %v145
    %v553 = vunpack.c.l.b16 %v146
    %v554 = vunpack.c.h.b16 %v146
    %v555 = vunpack.c.l.b16 %v147
    %v556 = vunpack.c.h.b16 %v147
    %v557 = vunpack.c.l.b16 %v148
    %v558 = vunpack.c.h.b16 %v148
    %v559 = vunpack.c.l.b16 %v149
    %v560 = vunpack.c.h.b16 %v149
    %v561 = vunpack.c.l.b16 %v150
    %v562 = vunpack.c.h.b16 %v150
    %v563 = vunpack.c.l.b16 %v151
    %v564 = vunpack.c.h.b16 %v151
    %v565 = vunpack.c.l.b16 %v152
    %v566 = vunpack.c.h.b16 %v152
    %v567 = vunpack.c.l.b16 %v153
    %v568 = vunpack.c.h.b16 %v153
    %v569 = vunpack.c.l.b16 %v154
    %v570 = vunpack.c.h.b16 %v154
    %v571 = vunpack.c.l.b16 %v155
    %v572 = vunpack.c.h.b16 %v155
    %v573 = vunpack.c.l.b16 %v156
    %v574 = vunpack.c.h.b16 %v156
    %v575 = vunpack.c.l.b16 %v157
    %v576 = vunpack.c.h.b16 %v157
    %v577 = vunpack.c.l.b16 %v158
    %v578 = vunpack.c.h.b16 %v158
    %v579 = vunpack.c.l.b16 %v159
    %v580 = vunpack.c.h.b16 %v159
    %v581 = vunpack.c.l.b16 %v160
    %v582 = vunpack.c.h.b16 %v160
    %v583 = vunpack.c.l.b16 %v161
    %v584 = vunpack.c.h.b16 %v161
    %v585 = vunpack.c.l.b16 %v162
    %v586 = vunpack.c.h.b16 %v162
    %v587 = vunpack.c.l.b16 %v163
    %v588 = vunpack.c.h.b16 %v163
    %v589 = vunpack.c.l.b16 %v164
    %v590 = vunpack.c.h.b16 %v164
    %v591 = vunpack.c.l.b16 %v165
    %v592 = vunpack.c.h.b16 %v165
    %v593 = vunpack.c.l.b16 %v166
    %v594 = vunpack.c.h.b16 %v166
    %v595 = vunpack.c.l.b16 %v167
    %v596 = vunpack.c.h.b16 %v167
    %v597 = vunpack.c.l.b16 %v168
    %v598 = vunpack.c.h.b16 %v168
    %v599 = vunpack.c.l.b16 %v169
    %v600 = vunpack.c.h.b16 %v169
    %v601 = vunpack.c.l.b16 %v170
    %v602 = vunpack.c.h.b16 %v170
    %v603 = vunpack.c.l.b16 %v171
    %v604 = vunpack.c.h.b16 %v171
    %v605 = vunpack.c.l.b16 %v172
    %v606 = vunpack.c.h.b16 %v172
    %v607 = vunpack.c.l.b16 %v173
    %v608 = vunpack.c.h.b16 %v173
    %v609 = vunpack.c.l.b16 %v174
    %v610 = vunpack.c.h.b16 %v174
    %v611 = vunpack.c.l.b16 %v175
    %v612 = vunpack.c.h.b16 %v175
    %v613 = vunpack.c.l.b16 %v176
    %v614 = vunpack.c.h.b16 %v176
    %v615 = vunpack.c.l.b16 %v177
    %v616 = vunpack.c.h.b16 %v177
    %v617 = vunpack.c.l.b16 %v178
    %v618 = vunpack.c.h.b16 %v178
    %v619 = vunpack.c.l.b16 %v179
    %v620 = vunpack.c.h.b16 %v179
    %v621 = vunpack.c.l.b16 %v180
    %v622 = vunpack.c.h.b16 %v180
    %v623 = vunpack.c.l.b16 %v181
    %v624 = vunpack.c.h.b16 %v181
    %v625 = vunpack.c.l.b16 %v182
    %v626 = vunpack.c.h.b16 %v182
    %v627 = vunpack.c.l.b16 %v183
    %v628 = vunpack.c.h.b16 %v183
    %v629 = vunpack.c.l.b16 %v184
    %v630 = vunpack.c.h.b16 %v184
    %v631 = vunpack.c.l.b16 %v185
    %v632 = vunpack.c.h.b16 %v185
    %v633 = vunpack.c.l.b16 %v186
    %v634 = vunpack.c.h.b16 %v186
    %v635 = vpack.c.b16 %v445, %v443
    %v636 = vpack.c.b16 %v446, %v444
    %v637 = vpack.c.b16 %v449, %v447
    %v638 = vpack.c.b16 %v450, %v448
    %v639 = vpack.c.b16 %v453, %v451
    %v640 = vpack.c.b16 %v454, %v452
    %v641 = vpack.c.b16 %v457, %v455
    %v642 = vpack.c.b16 %v458, %v456
    %v643 = vpack.c.b16 %v461, %v459
    %v644 = vpack.c.b16 %v462, %v460
    %v645 = vpack.c.b16 %v465, %v463
    %v646 = vpack.c.b16 %v466, %v464
    %v647 = vpack.c.b16 %v469, %v467
    %v648 = vpack.c.b16 %v470, %v468
    %v649 = vpack.c.b16 %v473, %v471
    %v650 = vpack.c.b16 %v474, %v472
    %v651 = vpack.c.b16 %v477, %v475
    %v652 = vpack.c.b16 %v478, %v476
    %v653 = vpack.c.b16 %v481, %v479
    %v654 = vpack.c.b16 %v482, %v480
    %v655 = vpack.c.b16 %v485, %v483
    %v656 = vpack.c.b16 %v486, %v484
    %v657 = vpack.c.b16 %v489, %v487
    %v658 = vpack.c.b16 %v490, %v488
    %v659 = vpack.c.b16 %v493, %v491
    %v660 = vpack.c.b16 %v494, %v492
    %v661 = vpack.c.b16 %v497, %v495
    %v662 = vpack.c.b16 %v498, %v496
    %v663 = vpack.c.b16 %v501, %v499
    %v664 = vpack.c.b16 %v502, %v500
    %v665 = vpack.c.b16 %v505, %v503
    %v666 = vpack.c.b16 %v506, %v504
    %v667 = vpack.c.b16 %v509, %v507
    %v668 = vpack.c.b16 %v510, %v508
    %v669 = vpack.c.b16 %v513, %v511
    %v670 = vpack.c.b16 %v514, %v512
    %v671 = vpack.c.b16 %v517, %v515
    %v672 = vpack.c.b16 %v518, %v516
    %v673 = vpack.c.b16 %v521, %v519
    %v674 = vpack.c.b16 %v522, %v520
    %v675 = vpack.c.b16 %v525, %v523
    %v676 = vpack.c.b16 %v526, %v524
    %v677 = vpack.c.b16 %v529, %v527
    %v678 = vpack.c.b16 %v530, %v528
    %v679 = vpack.c.b16 %v533, %v531
    %v680 = vpack.c.b16 %v534, %v532
    %v681 = vpack.c.b16 %v537, %v535
    %v682 = vpack.c.b16 %v538, %v536
    %v683 = vpack.c.b16 %v541, %v539
    %v684 = vpack.c.b16 %v542, %v540
    %v685 = vpack.c.b16 %v545, %v543
    %v686 = vpack.c.b16 %v546, %v544
    %v687 = vpack.c.b16 %v549, %v547
    %v688 = vpack.c.b16 %v550, %v548
    %v689 = vpack.c.b16 %v553, %v551
    %v690 = vpack.c.b16 %v554, %v552
    %v691 = vpack.c.b16 %v557, %v555
    %v692 = vpack.c.b16 %v558, %v556
    %v693 = vpack.c.b16 %v561, %v559
    %v694 = vpack.c.b16 %v562, %v560
    %v695 = vpack.c.b16 %v565, %v563
    %v696 = vpack.c.b16 %v566, %v564
    %v697 = vpack.c.b16 %v569, %v567
    %v698 = vpack.c.b16 %v570, %v568
    %v699 = vpack.c.b16 %v573, %v571
    %v700 = vpack.c.b16 %v574, %v572
    %v701 = vpack.c.b16 %v577, %v575
    %v702 = vpack.c.b16 %v578, %v576
    %v703 = vpack.c.b16 %v581, %v579
    %v704 = vpack.c.b16 %v582, %v580
    %v705 = vpack.c.b16 %v585, %v583
    %v706 = vpack.c.b16 %v586, %v584
    %v707 = vpack.c.b16 %v589, %v587
    %v708 = vpack.c.b16 %v590, %v588
    %v709 = vpack.c.b16 %v593, %v591
    %v710 = vpack.c.b16 %v594, %v592
    %v711 = vpack.c.b16 %v597, %v595
    %v712 = vpack.c.b16 %v598, %v596
    %v713 = vpack.c.b16 %v601, %v599
    %v714 = vpack.c.b16 %v602, %v600
    %v715 = vpack.c.b16 %v605, %v603
    %v716 = vpack.c.b16 %v606, %v604
    %v717 = vpack.c.b16 %v609, %v607
    %v718 = vpack.c.b16 %v610, %v608
    %v719 = vpack.c.b16 %v613, %v611
    %v720 = vpack.c.b16 %v614, %v612
    %v721 = vpack.c.b16 %v617, %v615
    %v722 = vpack.c.b16 %v618, %v616
    %v723 = vpack.c.b16 %v621, %v619
    %v724 = vpack.c.b16 %v622, %v620
    %v725 = vpack.c.b16 %v625, %v623
    %v726 = vpack.c.b16 %v626, %v624
    %v727 = vpack.c.b16 %v629, %v627
    %v728 = vpack.c.b16 %v630, %v628
    %v729 = vpack.c.b16 %v633, %v631
    %v730 = vpack.c.b16 %v634, %v632
    %827 = vmatprep.subr.bf16.mxu0 %v636
    %828 = vmatpush1.bf16.msra.mxu0 %v635
    %829 = vmatprep.subr.bf16.mxu0 %v638
    %830 = vmatpush1.bf16.msra.mxu0 %v637
    %831 = vmatprep.subr.bf16.mxu0 %v640
    %832 = vmatpush1.bf16.msra.mxu0 %v639
    %833 = vmatprep.subr.bf16.mxu0 %v642
    %834 = vmatpush1.bf16.msra.mxu0 %v641
    %835 = vmatprep.subr.bf16.mxu0 %v644
    %836 = vmatpush1.bf16.msra.mxu0 %v643
    %837 = vmatprep.subr.bf16.mxu0 %v646
    %838 = vmatpush1.bf16.msra.mxu0 %v645
    %839 = vmatprep.subr.bf16.mxu0 %v648
    %840 = vmatpush1.bf16.msra.mxu0 %v647
    %841 = vmatprep.subr.bf16.mxu0 %v650
    %842 = vmatpush1.bf16.msra.mxu0 %v649
    %843 = vmatprep.subr.bf16.mxu0 %v652
    %844 = vmatpush1.bf16.msra.mxu0 %v651
    %845 = vmatprep.subr.bf16.mxu0 %v654
    %846 = vmatpush1.bf16.msra.mxu0 %v653
    %847 = vmatprep.subr.bf16.mxu0 %v656
    %848 = vmatpush1.bf16.msra.mxu0 %v655
    %849 = vmatprep.subr.bf16.mxu0 %v658
    %850 = vmatpush1.bf16.msra.mxu0 %v657
    %851 = vmatprep.subr.bf16.mxu0 %v660
    %852 = vmatpush1.bf16.msra.mxu0 %v659
    %853 = vmatprep.subr.bf16.mxu0 %v662
    %854 = vmatpush1.bf16.msra.mxu0 %v661
    %855 = vmatprep.subr.bf16.mxu0 %v664
    %856 = vmatpush1.bf16.msra.mxu0 %v663
    %857 = vmatprep.subr.bf16.mxu0 %v666
    %858 = vmatpush1.bf16.msra.mxu0 %v665
    %859 = vmatprep.mubr.bf16.mxu0 %v338
    %860 = vmatmul.mubr.bf16.gmra.mrb[0].mxu0 %v335
    %v861 = vpop.f32.mrb[0].mxu0
    %v862 = vadd.f32 %v192, %v861
    %v863 = vpop.f32.mrb[0].mxu0
    %v864 = vadd.f32 %v196, %v863
    %v865 = vpop.f32.mrb[0].mxu0
    %v866 = vadd.f32 %v192, %v865
    %v867 = vpop.f32.mrb[0].mxu0
    %v868 = vadd.f32 %v196, %v867
    %869 = vdwg.mxu0
    %870 = vmatprep.subr.bf16.mxu0 %v668
    %871 = vmatpush1.bf16.msra.mxu0 %v667
    %872 = vmatprep.subr.bf16.mxu0 %v670
    %873 = vmatpush1.bf16.msra.mxu0 %v669
    %874 = vmatprep.subr.bf16.mxu0 %v672
    %875 = vmatpush1.bf16.msra.mxu0 %v671
    %876 = vmatprep.subr.bf16.mxu0 %v674
    %877 = vmatpush1.bf16.msra.mxu0 %v673
    %878 = vmatprep.subr.bf16.mxu0 %v676
    %879 = vmatpush1.bf16.msra.mxu0 %v675
    %880 = vmatprep.subr.bf16.mxu0 %v678
    %881 = vmatpush1.bf16.msra.mxu0 %v677
    %882 = vmatprep.subr.bf16.mxu0 %v680
    %883 = vmatpush1.bf16.msra.mxu0 %v679
    %884 = vmatprep.subr.bf16.mxu0 %v682
    %885 = vmatpush1.bf16.msra.mxu0 %v681
    %886 = vmatprep.subr.bf16.mxu0 %v684
    %887 = vmatpush1.bf16.msra.mxu0 %v683
    %888 = vmatprep.subr.bf16.mxu0 %v686
    %889 = vmatpush1.bf16.msra.mxu0 %v685
    %890 = vmatprep.subr.bf16.mxu0 %v688
    %891 = vmatpush1.bf16.msra.mxu0 %v687
    %892 = vmatprep.subr.bf16.mxu0 %v690
    %893 = vmatpush1.bf16.msra.mxu0 %v689
    %894 = vmatprep.subr.bf16.mxu0 %v692
    %895 = vmatpush1.bf16.msra.mxu0 %v691
    %896 = vmatprep.subr.bf16.mxu0 %v694
    %897 = vmatpush1.bf16.msra.mxu0 %v693
    %898 = vmatprep.subr.bf16.mxu0 %v696
    %899 = vmatpush1.bf16.msra.mxu0 %v695
    %900 = vmatprep.subr.bf16.mxu0 %v698
    %901 = vmatpush1.bf16.msra.mxu0 %v697
    %902 = vmatprep.mubr.bf16.mxu0 %v339
    %903 = vmatmul.mubr.bf16.gmra.mrb[0].mxu0 %v336
    %v904 = vpop.f32.mrb[0].mxu0
    %v905 = vadd.f32 %v862, %v904
    %v906 = vpop.f32.mrb[0].mxu0
    %v907 = vadd.f32 %v864, %v906
    %v908 = vpop.f32.mrb[0].mxu0
    %v909 = vadd.f32 %v866, %v908
    %v910 = vpop.f32.mrb[0].mxu0
    %v911 = vadd.f32 %v868, %v910
    %912 = vdwg.mxu0
    %913 = vmatprep.subr.bf16.mxu0 %v700
    %914 = vmatpush1.bf16.msra.mxu0 %v699
    %915 = vmatprep.subr.bf16.mxu0 %v702
    %916 = vmatpush1.bf16.msra.mxu0 %v701
    %917 = vmatprep.subr.bf16.mxu0 %v704
    %918 = vmatpush1.bf16.msra.mxu0 %v703
    %919 = vmatprep.subr.bf16.mxu0 %v706
    %920 = vmatpush1.bf16.msra.mxu0 %v705
    %921 = vmatprep.subr.bf16.mxu0 %v708
    %922 = vmatpush1.bf16.msra.mxu0 %v707
    %923 = vmatprep.subr.bf16.mxu0 %v710
    %924 = vmatpush1.bf16.msra.mxu0 %v709
    %925 = vmatprep.subr.bf16.mxu0 %v712
    %926 = vmatpush1.bf16.msra.mxu0 %v711
    %927 = vmatprep.subr.bf16.mxu0 %v714
    %928 = vmatpush1.bf16.msra.mxu0 %v713
    %929 = vmatprep.subr.bf16.mxu0 %v716
    %930 = vmatpush1.bf16.msra.mxu0 %v715
    %931 = vmatprep.subr.bf16.mxu0 %v718
    %932 = vmatpush1.bf16.msra.mxu0 %v717
    %933 = vmatprep.subr.bf16.mxu0 %v720
    %934 = vmatpush1.bf16.msra.mxu0 %v719
    %935 = vmatprep.subr.bf16.mxu0 %v722
    %936 = vmatpush1.bf16.msra.mxu0 %v721
    %937 = vmatprep.subr.bf16.mxu0 %v724
    %938 = vmatpush1.bf16.msra.mxu0 %v723
    %939 = vmatprep.subr.bf16.mxu0 %v726
    %940 = vmatpush1.bf16.msra.mxu0 %v725
    %941 = vmatprep.subr.bf16.mxu0 %v728
    %942 = vmatpush1.bf16.msra.mxu0 %v727
    %943 = vmatprep.subr.bf16.mxu0 %v730
    %944 = vmatpush1.bf16.msra.mxu0 %v729
    %945 = vmatprep.mubr.bf16.mxu0 %v340
    %946 = vmatmul.mubr.bf16.gmra.mrb[0].mxu0 %v337
    %v947 = vpop.f32.mrb[0].mxu0
    %v948 = vadd.f32 %v905, %v947
    %v949 = vpop.f32.mrb[0].mxu0
    %v950 = vadd.f32 %v907, %v949
    %v951 = vpop.f32.mrb[0].mxu0
    %v952 = vadd.f32 %v909, %v951
    %v953 = vpop.f32.mrb[0].mxu0
    %v954 = vadd.f32 %v911, %v953
    %955 = vdwg.mxu0
    %v956 = vmax.f32 %v948, 0.0
    %v957 = vmax.f32 %v950, 0.0
    %v958 = vmax.f32 %v952, 0.0
    %v959 = vmax.f32 %v954, 0.0
    %v960 = vpack.c.bf16 %v958, %v956
    %v961 = vpack.c.bf16 %v959, %v957
    %v962 = vld [vmem:[#allocation7] sm:$0xf]
    %v963 = vld [vmem:[#allocation7 + $0x4] sm:$0xf]
    %v964 = vld [vmem:[#allocation7 + $0x8] sm:$0xf]
    %v965 = vld [vmem:[#allocation7 + $0xc] sm:$0xf]
    %v966 = vld [vmem:[#allocation7 + $0x10] sm:$0xf]
    %v967 = vld [vmem:[#allocation7 + $0x14] sm:$0xf]
    %v968 = vld [vmem:[#allocation7 + $0x18] sm:$0xf]
    %v969 = vld [vmem:[#allocation7 + $0x1c] sm:$0xf]
    %v970 = vld [vmem:[#allocation7 + $0x20] sm:$0xf]
    %v971 = vld [vmem:[#allocation7 + $0x24] sm:$0xf]
    %v972 = vld [vmem:[#allocation7 + $0x28] sm:$0xf]
    %v973 = vld [vmem:[#allocation7 + $0x2c] sm:$0xf]
    %v974 = vld [vmem:[#allocation7 + $0x30] sm:$0xf]
    %v975 = vld [vmem:[#allocation7 + $0x34] sm:$0xf]
    %v976 = vld [vmem:[#allocation7 + $0x38] sm:$0xf]
    %v977 = vld [vmem:[#allocation7 + $0x3c] sm:$0xf]
    %v978 = vld [vmem:[#allocation7 + $0x40] sm:$0xf]
    %v979 = vld [vmem:[#allocation7 + $0x44] sm:$0xf]
    %v980 = vld [vmem:[#allocation7 + $0x48] sm:$0xf]
    %v981 = vld [vmem:[#allocation7 + $0x4c] sm:$0xf]
    %v982 = vld [vmem:[#allocation7 + $0x50] sm:$0xf]
    %v983 = vld [vmem:[#allocation7 + $0x54] sm:$0xf]
    %v984 = vld [vmem:[#allocation7 + $0x58] sm:$0xf]
    %v985 = vld [vmem:[#allocation7 + $0x5c] sm:$0xf]
    %v986 = vld [vmem:[#allocation7 + $0x60] sm:$0xf]
    %v987 = vld [vmem:[#allocation7 + $0x64] sm:$0xf]
    %v988 = vld [vmem:[#allocation7 + $0x68] sm:$0xf]
    %v989 = vld [vmem:[#allocation7 + $0x6c] sm:$0xf]
    %v990 = vld [vmem:[#allocation7 + $0x70] sm:$0xf]
    %v991 = vld [vmem:[#allocation7 + $0x74] sm:$0xf]
    %v992 = vld [vmem:[#allocation7 + $0x78] sm:$0xf]
    %v993 = vld [vmem:[#allocation7 + $0x7c] sm:$0xf]
    %v994 = vld [vmem:[%s4] sm:$0x1]
    %v996 = vlaneseq
    %v997 = vshrl.u32 %v996, 7
    %v998 = vsub.s32 0, %v997
    %v999 = vrot.slane %v994, %v998
    %v1033 = vunpack.c.l.b16 %v962
    %v1034 = vunpack.c.l.b16 %v963
    %v1035 = vunpack.c.l.b16 %v964
    %v1036 = vunpack.c.l.b16 %v965
    %v1037 = vunpack.c.l.b16 %v966
    %v1038 = vunpack.c.l.b16 %v967
    %v1039 = vunpack.c.l.b16 %v968
    %v1040 = vunpack.c.l.b16 %v969
    %v1041 = vunpack.c.l.b16 %v970
    %v1042 = vunpack.c.l.b16 %v971
    %v1043 = vunpack.c.l.b16 %v972
    %v1044 = vunpack.c.l.b16 %v973
    %v1045 = vunpack.c.l.b16 %v974
    %v1046 = vunpack.c.l.b16 %v975
    %v1047 = vunpack.c.l.b16 %v976
    %v1048 = vunpack.c.l.b16 %v977
    %v1049 = vunpack.c.l.b16 %v978
    %v1050 = vunpack.c.l.b16 %v979
    %v1051 = vunpack.c.l.b16 %v980
    %v1052 = vunpack.c.l.b16 %v981
    %v1053 = vunpack.c.l.b16 %v982
    %v1054 = vunpack.c.l.b16 %v983
    %v1055 = vunpack.c.l.b16 %v984
    %v1056 = vunpack.c.l.b16 %v985
    %v1057 = vunpack.c.l.b16 %v986
    %v1058 = vunpack.c.l.b16 %v987
    %v1059 = vunpack.c.l.b16 %v988
    %v1060 = vunpack.c.l.b16 %v989
    %v1061 = vunpack.c.l.b16 %v990
    %v1062 = vunpack.c.l.b16 %v991
    %v1063 = vunpack.c.l.b16 %v992
    %v1064 = vunpack.c.l.b16 %v993
    %v1065 = vpack.c.b16 %v1034, %v1033
    %v1066 = vpack.c.b16 %v1036, %v1035
    %v1067 = vpack.c.b16 %v1038, %v1037
    %v1068 = vpack.c.b16 %v1040, %v1039
    %v1069 = vpack.c.b16 %v1042, %v1041
    %v1070 = vpack.c.b16 %v1044, %v1043
    %v1071 = vpack.c.b16 %v1046, %v1045
    %v1072 = vpack.c.b16 %v1048, %v1047
    %v1073 = vpack.c.b16 %v1050, %v1049
    %v1074 = vpack.c.b16 %v1052, %v1051
    %v1075 = vpack.c.b16 %v1054, %v1053
    %v1076 = vpack.c.b16 %v1056, %v1055
    %v1077 = vpack.c.b16 %v1058, %v1057
    %v1078 = vpack.c.b16 %v1060, %v1059
    %v1079 = vpack.c.b16 %v1062, %v1061
    %v1080 = vpack.c.b16 %v1064, %v1063
    %1097 = vmatprep.subr.bf16.mxu0 0
    %1098 = vmatpush1.bf16.msra.mxu0 %v1065
    %1099 = vmatprep.subr.bf16.mxu0 0
    %1100 = vmatpush1.bf16.msra.mxu0 %v1066
    %1101 = vmatprep.subr.bf16.mxu0 0
    %1102 = vmatpush1.bf16.msra.mxu0 %v1067
    %1103 = vmatprep.subr.bf16.mxu0 0
    %1104 = vmatpush1.bf16.msra.mxu0 %v1068
    %1105 = vmatprep.subr.bf16.mxu0 0
    %1106 = vmatpush1.bf16.msra.mxu0 %v1069
    %1107 = vmatprep.subr.bf16.mxu0 0
    %1108 = vmatpush1.bf16.msra.mxu0 %v1070
    %1109 = vmatprep.subr.bf16.mxu0 0
    %1110 = vmatpush1.bf16.msra.mxu0 %v1071
    %1111 = vmatprep.subr.bf16.mxu0 0
    %1112 = vmatpush1.bf16.msra.mxu0 %v1072
    %1113 = vmatprep.subr.bf16.mxu0 0
    %1114 = vmatpush1.bf16.msra.mxu0 %v1073
    %1115 = vmatprep.subr.bf16.mxu0 0
    %1116 = vmatpush1.bf16.msra.mxu0 %v1074
    %1117 = vmatprep.subr.bf16.mxu0 0
    %1118 = vmatpush1.bf16.msra.mxu0 %v1075
    %1119 = vmatprep.subr.bf16.mxu0 0
    %1120 = vmatpush1.bf16.msra.mxu0 %v1076
    %1121 = vmatprep.subr.bf16.mxu0 0
    %1122 = vmatpush1.bf16.msra.mxu0 %v1077
    %1123 = vmatprep.subr.bf16.mxu0 0
    %1124 = vmatpush1.bf16.msra.mxu0 %v1078
    %1125 = vmatprep.subr.bf16.mxu0 0
    %1126 = vmatpush1.bf16.msra.mxu0 %v1079
    %1127 = vmatprep.subr.bf16.mxu0 0
    %1128 = vmatpush1.bf16.msra.mxu0 %v1080
    %1129 = vmatprep.mubr.bf16.mxu0 %v961
    %1130 = vmatmul.mubr.bf16.gmra.mrb[0].mxu0 %v960
    %v1131 = vpop.f32.mrb[0].mxu0
    %v1132 = vadd.f32 %v999, %v1131
    %v1133 = vpop.f32.mrb[0].mxu0
    %v1134 = vpop.f32.mrb[0].mxu0
    %v1135 = vadd.f32 %v999, %v1134
    %v1136 = vpop.f32.mrb[0].mxu0
    %1137 = vdwg.mxu0
    %v1138 = vmax.f32 %v1132, 0.0
    %v1139 = vmax.f32 %v1135, 0.0
    %v1140 = vld [vmem:[#allocation8] sm:$0xff]
    %v1141 = vld [vmem:[#allocation8 + $0x8] sm:$0xff]
    %v1142 = vld [vmem:[#allocation8 + $0x10] sm:$0xff]
    %v1143 = vld [vmem:[#allocation8 + $0x18] sm:$0xff]
    %v1144 = vld [vmem:[#allocation8 + $0x20] sm:$0xff]
    %v1145 = vld [vmem:[#allocation8 + $0x28] sm:$0xff]
    %v1146 = vld [vmem:[#allocation8 + $0x30] sm:$0xff]
    %v1147 = vld [vmem:[#allocation8 + $0x38] sm:$0xff]
    %v1148 = vld [vmem:[#allocation8 + $0x40] sm:$0xff]
    %v1149 = vld [vmem:[#allocation8 + $0x48] sm:$0xff]
    %v1150 = vld [vmem:[#allocation8 + $0x50] sm:$0xff]
    %v1151 = vld [vmem:[#allocation8 + $0x58] sm:$0xff]
    %v1152 = vld [vmem:[#allocation8 + $0x60] sm:$0xff]
    %v1153 = vld [vmem:[#allocation8 + $0x68] sm:$0xff]
    %v1154 = vld [vmem:[#allocation8 + $0x70] sm:$0xff]
    %v1155 = vld [vmem:[#allocation8 + $0x78] sm:$0xff]
    %v1156 = vld [vmem:[%s6] sm:$0x1]
    %v1158 = vlaneseq
    %v1159 = vshrl.u32 %v1158, 7
    %v1160 = vsub.s32 0, %v1159
    %v1161 = vrot.slane %v1156, %v1160
    %1163 = vmatprep.subr.mxu0 0.0
    %1164 = vmatpush1.msra.mxu0 %v1140
    %1165 = vmatprep.subr.mxu0 0.0
    %1166 = vmatpush1.msra.mxu0 %v1141
    %1167 = vmatprep.subr.mxu0 0.0
    %1168 = vmatpush1.msra.mxu0 %v1142
    %1169 = vmatprep.subr.mxu0 0.0
    %1170 = vmatpush1.msra.mxu0 %v1143
    %1171 = vmatprep.subr.mxu0 0.0
    %1172 = vmatpush1.msra.mxu0 %v1144
    %1173 = vmatprep.subr.mxu0 0.0
    %1174 = vmatpush1.msra.mxu0 %v1145
    %1175 = vmatprep.subr.mxu0 0.0
    %1176 = vmatpush1.msra.mxu0 %v1146
    %1177 = vmatprep.subr.mxu0 0.0
    %1178 = vmatpush1.msra.mxu0 %v1147
    %1179 = vmatprep.subr.mxu0 0.0
    %1180 = vmatpush1.msra.mxu0 %v1148
    %1181 = vmatprep.subr.mxu0 0.0
    %1182 = vmatpush1.msra.mxu0 %v1149
    %1183 = vmatprep.subr.mxu0 0.0
    %1184 = vmatpush1.msra.mxu0 %v1150
    %1185 = vmatprep.subr.mxu0 0.0
    %1186 = vmatpush1.msra.mxu0 %v1151
    %1187 = vmatprep.subr.mxu0 0.0
    %1188 = vmatpush1.msra.mxu0 %v1152
    %1189 = vmatprep.subr.mxu0 0.0
    %1190 = vmatpush1.msra.mxu0 %v1153
    %1191 = vmatprep.subr.mxu0 0.0
    %1192 = vmatpush1.msra.mxu0 %v1154
    %1193 = vmatprep.subr.mxu0 0.0
    %1194 = vmatpush1.msra.mxu0 %v1155
    %1195 = vmatprep.subr.mxu0 0.0
    %1196 = vmatpush1.msra.mxu0 0.0
    %1197 = vmatprep.subr.mxu0 0.0
    %1198 = vmatpush1.msra.mxu0 0.0
    %1199 = vmatprep.subr.mxu0 0.0
    %1200 = vmatpush1.msra.mxu0 0.0
    %1201 = vmatprep.subr.mxu0 0.0
    %1202 = vmatpush1.msra.mxu0 0.0
    %1203 = vmatprep.subr.mxu0 0.0
    %1204 = vmatpush1.msra.mxu0 0.0
    %1205 = vmatprep.subr.mxu0 0.0
    %1206 = vmatpush1.msra.mxu0 0.0
    %1207 = vmatprep.subr.mxu0 0.0
    %1208 = vmatpush1.msra.mxu0 0.0
    %1209 = vmatprep.subr.mxu0 0.0
    %1210 = vmatpush1.msra.mxu0 0.0
    %1211 = vmatprep.subr.mxu0 0.0
    %1212 = vmatpush1.msra.mxu0 0.0
    %1213 = vmatprep.subr.mxu0 0.0
    %1214 = vmatpush1.msra.mxu0 0.0
    %1215 = vmatprep.subr.mxu0 0.0
    %1216 = vmatpush1.msra.mxu0 0.0
    %1217 = vmatprep.subr.mxu0 0.0
    %1218 = vmatpush1.msra.mxu0 0.0
    %1219 = vmatprep.subr.mxu0 0.0
    %1220 = vmatpush1.msra.mxu0 0.0
    %1221 = vmatprep.subr.mxu0 0.0
    %1222 = vmatpush1.msra.mxu0 0.0
    %1223 = vmatprep.subr.mxu0 0.0
    %1224 = vmatpush1.msra.mxu0 0.0
    %1225 = vmatprep.subr.mxu0 0.0
    %1226 = vmatpush1.msra.mxu0 0.0
    %1227 = vmatprep.mubr.f32.mxu0 0.0
    %1228 = vmatmul.mubr.f32.gmra.mrb[0].mxu0 %v1138
    %v1229 = vpop.f32.mrb[0].mxu0
    %v1230 = vadd.f32 %v1161, %v1229
    %v1231 = vpop.f32.mrb[0].mxu0
    %1232 = vmatprep.mubr.f32.mxu0 0.0
    %1233 = vmatmul.mubr.f32.gmra.mrb[0].mxu0 %v1139
    %v1234 = vpop.f32.mrb[0].mxu0
    %v1235 = vadd.f32 %v1161, %v1234
    %v1236 = vpop.f32.mrb[0].mxu0
    %1237 = vdwg.mxu0
    %1238 = vst [vmem:[#allocation10] sm:$0xff] %v1230
    %1239 = vst [vmem:[#allocation10 + $0x8] sm:$0xff] %v1235
    // Predicated region
    $region46: #{tpu_custom_call.1} parent=1 // pred_check
      _
    $region47: #{tpu_custom_call.1} parent=1 // pred_check_branch
      %1241 = sbr.rel (0) target = $region49
    $region48: #{tpu_custom_call.1} parent=1 // pred_region
      %s1243 = ssub.s32 256, 32
      %1244 = vsyncadd [#allocation4], %s1243
      %s1245 = sshll.u32 [#allocation10], 4
      %s1246 = int_to_ptr.vmem [resolvable:$true] %s1245
      %1251 = dma.vmem_to_hbm [thread:$0]  %s1246, 32, %s7, [#allocation4], 32, 32, 2
    $region49: #{tpu_custom_call.1} parent=1 // pred_fallthru
      _
    // Predicated region
    $region50: #{tpu_custom_call.1} parent=1 // pred_check
      _
    $region51: #{tpu_custom_call.1} parent=1 // pred_check_branch
      %1253 = sbr.rel (0) target = $region53
    $region52: #{tpu_custom_call.1} parent=1 // pred_region
      %1254 = dma.done [#allocation4], 256
    $region53: #{tpu_custom_call.1} parent=1 // pred_fallthru
      _
    %1255 = vsyncpa [#allocation3], 1
    %1256 = vsyncpa [#allocation6], 1
    %1257 = vsyncpa [#allocation9], 1
    %1258 = vsyncpa [#allocation4], 1

</llo_original>
